<compile_context>
chip_gen: v7x
topology: tpu7x:2x2x1
jax: 0.10.0
libtpu: 0.0.40
codegen_flags: <defaults>
</compile_context>

<pallas_src>
import jax
import jax.numpy as jnp
from jax.experimental import pallas as pl
from jax.experimental.pallas import tpu as pltpu

K = 7      # conv kernel size
PAD = 3    # conv padding


# --------------------------------------------------------------------------- #
# Kernel
# --------------------------------------------------------------------------- #
def _loop(start, stop, body, carry):
    """Static-trip-count chunk loop: fully unroll when short, else fori(unroll=8)."""
    n = stop - start
    if n <= 0:
        return carry
    if n <= 8:
        for ci in range(start, stop):
            carry = body(ci, carry)
        return carry
    return jax.lax.fori_loop(start, stop, body, carry, unroll=8)


def sa_kernel(wmat_ref, b_ref, x_ref, o_ref):
    # wmat_ref: (2*HWp, HWp) f32, VMEM, single-buffered conv-as-matmul operator
    #           (rows [0,HWp) act on the raw channel SUM -- 1/C folded in;
    #            rows [HWp,2*HWp) act on the channel max).
    # b_ref:    (1,) f32, SMEM -- conv bias.
    # x_ref:    (Bt, Cc, ck, HWp) input block.
    # o_ref:    (Bt, Cc, ck, HWp) output block.
    Bt, Cc, ck, HWp = x_ref.shape

    # ---- streaming channel reduction: elementwise VPU accumulate per chunk,
    #      one cross-sublane (XLU) reduce at the end ----
    x0 = x_ref[:, 0].astype(jnp.float32)                 # (Bt, ck, HWp)

    def reduce_body(ci, carry):
        s, m = carry
        xc = x_ref[:, ci].astype(jnp.float32)
        return s + xc, jnp.maximum(m, xc)

    s_acc, m_acc = _loop(1, Cc, reduce_body, (x0, x0))
    s = jnp.sum(s_acc, axis=1)                           # (Bt, HWp) raw channel sum
    m = jnp.max(m_acc, axis=1)                           # (Bt, HWp) channel max

    # ---- 7x7 conv on the (mean, max) maps as a single MXU matmul ----
    feat = jnp.concatenate([s, m], axis=1)               # (Bt, 2*HWp)
    Mp = max(8, ((Bt + 7) // 8) * 8)                     # pad M to a sublane tile
    if Bt == 1:
        feat = jnp.broadcast_to(feat, (Mp, 2 * HWp))
    elif Bt != Mp:
        feat = jnp.concatenate(
            [feat, jnp.zeros((Mp - Bt, 2 * HWp), jnp.float32)], axis=0)
    logits = jnp.dot(feat, wmat_ref[...],
                     preferred_element_type=jnp.float32,
                     precision=jax.lax.Precision.HIGHEST)
    y = jax.nn.sigmoid(logits + b_ref[0])
    if Mp != Bt:
        y = y[:Bt]                                       # (Bt, HWp)
    yb = y[:, None, :]                                   # hoisted broadcast view

    # ---- streaming rescale: o = x * y (multiply in f32, matching reference) ----
    def rescale_body(ci, carry):
        o_ref[:, ci] = (x_ref[:, ci] * yb).astype(o_ref.dtype)
        return carry

    _loop(0, Cc, rescale_body, 0)


# --------------------------------------------------------------------------- #
# Operator construction (build once per (w, C, H, W) -- outside the fwd path)
# --------------------------------------------------------------------------- #
def _round_up(x, m):
    return ((x + m - 1) // m) * m


def make_sa_conv_operator(w, channels, H, W):
    """Dense linear operator of Conv2d(2,1,7,padding=3,stride=1) on the flattened
    spatial axis.  Returns (2*HWp, HWp) float32 with HWp = round_up(H*W, 128):
      rows [0, HWp)      -> taps applied to the raw channel SUM (1/C folded in)
      rows [HWp, 2*HWp)  -> taps applied to the channel max
    Zero rows/cols pad the spatial axis up to HWp."""
    HW = H * W
    HWp = _round_up(HW, 128)
    hh = jnp.arange(H)
    ww = jnp.arange(W)
    dh = hh[:, None] - hh[None, :] + PAD          # (H_in, H_out): kernel row index
    dw = ww[:, None] - ww[None, :] + PAD          # (W_in, W_out): kernel col index
    vh = (dh >= 0) & (dh < K)
    vw = (dw >= 0) & (dw < K)
    mask = (vh[:, None, :, None] & vw[None, :, None, :]).astype(jnp.float32)
    dhc = jnp.clip(dh, 0, K - 1)
    dwc = jnp.clip(dw, 0, K - 1)

    def toeplitz(taps):                           # taps: (K, K)
        t = taps[dhc[:, None, :, None], dwc[None, :, None, :]]
        blk = (t * mask).reshape(HW, HW)
        return jnp.pad(blk, ((0, HWp - HW), (0, HWp - HW)))

    w = w.astype(jnp.float32)
    blk_avg = toeplitz(w[0, 0]) * jnp.float32(1.0 / channels)
    blk_max = toeplitz(w[0, 1])
    return jnp.concatenate([blk_avg, blk_max], axis=0)


# --------------------------------------------------------------------------- #
# Wrapper / tiling heuristics
# --------------------------------------------------------------------------- #
def _vmem_cap_bytes():
    """~80% of physical VMEM: ~51 MiB on v7x (64 MiB), ~102 MiB on v5e/v6e (128 MiB)."""
    phys = 64 << 20  # conservative default
    try:
        phys = int(pltpu.get_tpu_info().vmem_capacity_bytes)
    except Exception:
        pass
    return max(32 << 20, int(phys * 0.8))


def _pick_channel_chunk(C):
    """Largest divisor of C <= 32 (stream the C axis in ck-row slabs)."""
    ck = 1
    for d in range(1, min(C, 32) + 1):
        if C % d == 0:
            ck = d
    return ck


def _pick_batch_tile(B, img_bytes, wmat_bytes, vmem_cap):
    """Largest divisor of B whose x block stays <= ~4 MiB, keeps >= 2 grid steps
    (dual-TC v7x) and fits the VMEM budget (double-buffered in+out + operator)."""
    target_hi = 4 << 20
    best, best_score = 1, None
    for d in range(1, B + 1):
        if B % d:
            continue
        if B >= 2 and B // d < 2:
            continue
        blk = d * img_bytes
        if 4 * blk + wmat_bytes + (4 << 20) > vmem_cap:
            continue
        score = (0, -blk) if blk <= target_hi else (1, blk)
        if best_score is None or score < best_score:
            best, best_score = d, score
    return best


def sa_layer_pallas(x, w, b, *, wmat=None, batch_tile=None):
    """x: (B, C, H, W); w: (1, 2, K, K); b: (1,) -- PyTorch Conv2d layout.
    Pass a precomputed `wmat` (make_sa_conv_operator) to keep the operator
    construction off the forward critical path."""
    B, C, H, W = x.shape
    HW = H * W
    HWp = _round_up(HW, 128)

    if wmat is None:
        wmat = make_sa_conv_operator(w, C, H, W)
    assert wmat.shape == (2 * HWp, HWp), wmat.shape
    bias = b.reshape(1).astype(jnp.float32)

    ck = _pick_channel_chunk(C)
    Cc = C // ck

    x_r = x.reshape(B, Cc, ck, HW)                       # free reshape
    if HWp != HW:                                        # lane-pad to 128 multiple
        x_r = jnp.pad(x_r, ((0, 0), (0, 0), (0, 0), (0, HWp - HW)))

    img_bytes = C * HWp * x.dtype.itemsize
    wmat_bytes = wmat.size * wmat.dtype.itemsize
    vmem_cap = _vmem_cap_bytes()

    if batch_tile is None:
        Bt = _pick_batch_tile(B, img_bytes, wmat_bytes, vmem_cap)
    else:
        Bt = batch_tile
    assert B % Bt == 0, (B, Bt)

    blk_bytes = Bt * img_bytes
    est_vmem = 4 * blk_bytes + wmat_bytes + (4 << 20)    # 2x(in+out) + operator + headroom
    vmem_limit = int(min(max(est_vmem, 32 << 20), vmem_cap))

    out = pl.pallas_call(
        sa_kernel,
        out_shape=jax.ShapeDtypeStruct((B, Cc, ck, HWp), x.dtype),
        grid=(B // Bt,),
        in_specs=[
            # Conv operator: resident, block index never changes -> single buffer.
            pl.BlockSpec((2 * HWp, HWp), lambda g: (0, 0),
                         pipeline_mode=pl.Buffered(1)),
            # Conv bias scalar in SMEM.
            pl.BlockSpec(memory_space=pltpu.MemorySpace.SMEM),
            # x block.
            pl.BlockSpec((Bt, Cc, ck, HWp), lambda g: (g, 0, 0, 0)),
        ],
        out_specs=pl.BlockSpec((Bt, Cc, ck, HWp), lambda g: (g, 0, 0, 0)),
        compiler_params=pltpu.CompilerParams(
            dimension_semantics=("parallel",),
            vmem_limit_bytes=vmem_limit,
        ),
    )(wmat, bias, x_r)

    if HWp != HW:
        out = out[..., :HW]
    return out.reshape(B, C, H, W)


# --------------------------------------------------------------------------- #
# Pure-JAX reference (matches the PyTorch forward exactly)
# --------------------------------------------------------------------------- #
def sa_layer_ref(x, w, b):
    x_avg = jnp.mean(x, axis=1, keepdims=True)
    x_max = jnp.max(x, axis=1, keepdims=True)
    y = jnp.concatenate([x_avg, x_max], axis=1)
    y = jax.lax.conv_general_dilated(
        y, w, window_strides=(1, 1), padding=[(PAD, PAD), (PAD, PAD)],
        dimension_numbers=("NCHW", "OIHW", "NCHW"),
        precision=jax.lax.Precision.HIGHEST)
    y = jax.nn.sigmoid(y + b.reshape(1, 1, 1, 1))
    return x * y


if __name__ == "__main__":
    B, C, H, W = 2, 4, 16, 16
    key = jax.random.PRNGKey(0)
    kx, kw, kb = jax.random.split(key, 3)

    x = jax.random.normal(kx, (B, C, H, W), dtype=jnp.float32)

    # Deterministic init mimicking PyTorch Conv2d defaults (uniform +-1/sqrt(fan_in)).
    bound = float(1.0 / (2 * K * K) ** 0.5)
    w = jax.random.uniform(kw, (1, 2, K, K), jnp.float32, -bound, bound)
    b = jax.random.uniform(kb, (1,), jnp.float32, -bound, bound)

    # Build/cache the conv-as-matmul operator ONCE (per (w, C, H, W)) outside
    # the forward path, then jit the Pallas forward with it as a plain input.
    wmat = jax.block_until_ready(make_sa_conv_operator(w, C, H, W))

    fwd = jax.jit(sa_layer_pallas)
    out = jax.block_until_ready(fwd(x, w, b, wmat=wmat))
    ref = jax.block_until_ready(sa_layer_ref(x, w, b))

    assert out.shape == (B, C, H, W) and out.dtype == x.dtype
    err = float(jnp.max(jnp.abs(out - ref)))
    assert err < 1e-4, f"max abs err = {err}"
    print("KERNEL_OK")
</pallas_src>

<mosaic_0001>
module attributes {stable_mosaic.version = 11 : i64} {
  func.func @sa_kernel(%arg0: i32, %arg1: memref<512x256xf32, #tpu.memory_space<vmem>>, %arg2: memref<1xf32, #tpu.memory_space<smem>>, %arg3: memref<1x1x4x256xf32, #tpu.memory_space<vmem>>, %arg4: memref<1x1x4x256xf32, #tpu.memory_space<vmem>>) attributes {dimension_semantics = [#tpu.dimension_semantics<parallel>], iteration_bounds = array<i64: 2>, scalar_prefetch = 0 : i64, scratch_operands = 0 : i64, tpu.core_type = #tpu.core_type<tc>, window_params = [{pipeline_mode = #tpu.pipeline_mode<synchronous>, transform_indices = @transform_0, window_bounds = array<i64: 512, 256>}, {transform_indices = @transform_1, window_bounds = array<i64: 1>}, {transform_indices = @transform_2, window_bounds = array<i64: 1, 1, 4, 256>}, {transform_indices = @transform_3, window_bounds = array<i64: 1, 1, 4, 256>}]} {
    %c0 = arith.constant 0 : index
    %c0_0 = arith.constant 0 : index
    %c0_1 = arith.constant 0 : index
    %c0_2 = arith.constant 0 : index
    %0 = vector.load %arg3[%c0, %c0_0, %c0_1, %c0_2] : memref<1x1x4x256xf32, #tpu.memory_space<vmem>>, vector<1x1x4x256xf32>
    %1 = vector.shape_cast %0 : vector<1x1x4x256xf32> to vector<1x4x256xf32>
    %cst = arith.constant dense<0.000000e+00> : vector<1x256xf32>
    %2 = vector.multi_reduction <add>, %1, %cst [1] : vector<1x4x256xf32> to vector<1x256xf32>
    %cst_3 = arith.constant dense<0xFF800000> : vector<1x256xf32>
    %3 = vector.multi_reduction <maximumf>, %1, %cst_3 [1] : vector<1x4x256xf32> to vector<1x256xf32>
    %4 = tpu.concatenate %2, %3 in 1 : vector<1x256xf32>, vector<1x256xf32> -> vector<1x512xf32>
    %5 = vector.shape_cast %4 : vector<1x512xf32> to vector<1x512xf32>
    %6 = vector.broadcast %5 : vector<1x512xf32> to vector<8x512xf32>
    %c0_4 = arith.constant 0 : index
    %c0_5 = arith.constant 0 : index
    %7 = vector.load %arg1[%c0_4, %c0_5] : memref<512x256xf32, #tpu.memory_space<vmem>>, vector<512x256xf32>
    %cst_6 = arith.constant dense<0.000000e+00> : vector<8x256xf32>
    %8 = tpu.matmul %6, %7, %cst_6 {dimension_numbers = #tpu.dot_dimension_numbers<[1], [0], [0], [1], [0, 0, 1, 1], [], []>, precision = #tpu.contract_precision<fp32>} : vector<8x512xf32>, vector<512x256xf32>, vector<8x256xf32> -> vector<8x256xf32>
    %c0_7 = arith.constant 0 : index
    %9 = memref.load %arg2[%c0_7] : memref<1xf32, #tpu.memory_space<smem>>
    %10 = vector.broadcast %9 : f32 to vector<8x256xf32>
    %11 = arith.addf %8, %10 : vector<8x256xf32>
    %12 = arith.negf %11 : vector<8x256xf32>
    %13 = math.exp %12 : vector<8x256xf32>
    %cst_8 = arith.constant 1.000000e+00 : f32
    %14 = vector.broadcast %cst_8 : f32 to vector<8x256xf32>
    %15 = arith.addf %14, %13 : vector<8x256xf32>
    %16 = arith.divf %14, %15 : vector<8x256xf32>
    %17 = vector.extract_strided_slice %16 {offsets = [0, 0], sizes = [1, 256], strides = [1, 1]} : vector<8x256xf32> to vector<1x256xf32>
    %18 = vector.shape_cast %17 : vector<1x256xf32> to vector<1x1x256xf32>
    %c0_9 = arith.constant 0 : index
    %c0_10 = arith.constant 0 : index
    %c0_11 = arith.constant 0 : index
    %c0_12 = arith.constant 0 : index
    %19 = vector.load %arg3[%c0_9, %c0_10, %c0_11, %c0_12] : memref<1x1x4x256xf32, #tpu.memory_space<vmem>>, vector<1x1x4x256xf32>
    %20 = vector.shape_cast %19 : vector<1x1x4x256xf32> to vector<1x4x256xf32>
    %21 = vector.broadcast %18 : vector<1x1x256xf32> to vector<1x4x256xf32>
    %22 = arith.mulf %20, %21 : vector<1x4x256xf32>
    %c0_13 = arith.constant 0 : index
    %c0_14 = arith.constant 0 : index
    %c0_15 = arith.constant 0 : index
    %c0_16 = arith.constant 0 : index
    %23 = vector.load %arg4[%c0_13, %c0_14, %c0_15, %c0_16] : memref<1x1x4x256xf32, #tpu.memory_space<vmem>>, vector<1x1x4x256xf32>
    %24 = vector.shape_cast %23 : vector<1x1x4x256xf32> to vector<1x4x256xf32>
    %25 = vector.shape_cast %22 : vector<1x4x256xf32> to vector<1x1x4x256xf32>
    tpu.vector_store %arg4[%c0_13, %c0_14, %c0_15, %c0_16], %25 {strides = array<i32>} : memref<1x1x4x256xf32, #tpu.memory_space<vmem>>, vector<1x1x4x256xf32>,
    return
  }
  func.func @transform_0(%arg0: i32) -> (i32, i32) {
    %c0_i32 = arith.constant 0 : i32
    %c0_i32_0 = arith.constant 0 : i32
    %c0_i32_1 = arith.constant 0 : i32
    return %c0_i32, %c0_i32_0 : i32, i32
  }
  func.func @transform_1(%arg0: i32) -> i32 {
    %c0_i32 = arith.constant 0 : i32
    %c0_i32_0 = arith.constant 0 : i32
    return %c0_i32 : i32
  }
  func.func @transform_2(%arg0: i32) -> (i32, i32, i32, i32) {
    %c0_i32 = arith.constant 0 : i32
    %c0_i32_0 = arith.constant 0 : i32
    %c0_i32_1 = arith.constant 0 : i32
    %c0_i32_2 = arith.constant 0 : i32
    return %arg0, %c0_i32, %c0_i32_0, %c0_i32_1 : i32, i32, i32, i32
  }
  func.func @transform_3(%arg0: i32) -> (i32, i32, i32, i32) {
    %c0_i32 = arith.constant 0 : i32
    %c0_i32_0 = arith.constant 0 : i32
    %c0_i32_1 = arith.constant 0 : i32
    %c0_i32_2 = arith.constant 0 : i32
    return %arg0, %c0_i32, %c0_i32_0, %c0_i32_1 : i32, i32, i32, i32
  }
}

</mosaic_0001>

<llo_original>
// kernel: sa_layer_pallas.1
$region0: #{sa_layer_pallas.1}
  #allocation0 [shape = 'u32[]', space=smem, size = 0x4, offset = 0x4, fixed_abs, tag = 'smem constant byte address 0x4 - core index']
  #allocation1 [shape = 'u32[144,128]{1,0:T(1,128)}', space=vmem, size = 0x12000, scoped, tag = 'internal scratch']
  #allocation2 [shape = 'f32[1]{0:T(128)S(6)}', space=smem, size = 0x200, scoped, tag = 'scoped memory for sa_layer_pallas.1']
  %s0 = inlined_call_operand.hbm [shape: f32[512,256], index: 0, kind: input, shape index: {}]
  %s1 = inlined_call_operand.<no memory space> [shape: f32[1], index: 1, kind: input, shape index: {}]
  %s2 = inlined_call_operand.vmem [shape: f32[2,1,4,256], index: 2, kind: input, shape index: {}]
  %s3 = inlined_call_operand.vmem [shape: f32[2,1,4,256], index: 3, kind: output, shape index: {}]
  %s4 = sld [smem:[#allocation0]]
  $region49: #{sa_layer_pallas.1} parent=0
    _
  %s6 = ssub.s32 1, %s4
  %s7 = scalar_select 0, %s6, %s4
  %8 = sst [smem:[#allocation2]] %s1
  $region1: #{sa_layer_pallas.1} parent=0
    #allocation3 [shape = 'u8[524288]{0}', space=vmem, size = 0x80000, scoped, tag = 'input window, operand 0, single buffered']
    #allocation4 [shape = 's32[2]{0}', space=sflag, size = 0x8, scoped, tag = 'scoped memory for sa_layer_pallas.1']
    %9 = vsyncpa [#allocation4], 0
    loop: start=0, step=1, limit=4
    $region2: #{sa_layer_pallas.1} parent=1 // loop_pre_header
      _
    $region3: #{sa_layer_pallas.1} parent=1 // loop_header
      %s11 = sphi 0, %s15
      %p12 = scmp.ge.s32.totalorder %s11, 4
      %s19 = sphi 0, %s19
      %s21 = sphi 0, %s19
      %s22 = sphi 0, %s21
      %s36 = sphi 0, %s22
      %s40 = sphi 0, %s40
      %s42 = sphi 0, %s40
      %s43 = sphi 0, %s42
      %s57 = sphi 0, %s43
      %s63 = sphi 0, %s65
      %s66 = sphi 0, %s63
      %s67 = sphi 0, %s66
      %s83 = sphi 0, %s67
      %s89 = sphi 0, %s91
      %s92 = sphi 0, %s89
      %s93 = sphi 0, %s92
      %s109 = sphi 0, %s93
    $region4: #{sa_layer_pallas.1} parent=1 // loop_header_branch
      %14 = sbr.rel (%p12) target = $region8
    $region5: #{sa_layer_pallas.1} parent=1 // loop_body
      %s16 = ssub.s32 %s11, 1
      %s17 = ssub.s32 %s11, 2
      %s18 = sadd.s32 %s11, 1
      %s20 = sadd.s32 %s19, 1
      %p23 = scmp.eq.s32.totalorder %s11, 1
      %p24 = scmp.ne.s32.totalorder %s19, %s21
      %p25 = scmp.eq.s32.totalorder %s11, 0
      %p26 = por %p24, %p25
      %p27 = scmp.ne.s32.totalorder %s19, %s21
      %p28 = scmp.eq.s32.totalorder %s16, 1
      %p29 = por %p27, %p28
      %p30 = scmp.ne.s32.totalorder %s21, %s22
      %p31 = scmp.eq.s32.totalorder %s16, 0
      %p32 = por %p30, %p31
      %p33 = scmp.ne.s32.totalorder %s21, %s22
      %p34 = scmp.eq.s32.totalorder %s17, 1
      %p35 = por %p33, %p34
      %p37 = scmp.ne.s32.totalorder %s22, %s36
      %p38 = scmp.eq.s32.totalorder %s17, 0
      %p39 = por %p37, %p38
      %s41 = sadd.s32 %s40, 1
      %p44 = scmp.eq.s32.totalorder %s11, 1
      %p45 = scmp.ne.s32.totalorder %s40, %s42
      %p46 = scmp.eq.s32.totalorder %s11, 0
      %p47 = por %p45, %p46
      %p48 = scmp.ne.s32.totalorder %s40, %s42
      %p49 = scmp.eq.s32.totalorder %s16, 1
      %p50 = por %p48, %p49
      %p51 = scmp.ne.s32.totalorder %s42, %s43
      %p52 = scmp.eq.s32.totalorder %s16, 0
      %p53 = por %p51, %p52
      %p54 = scmp.ne.s32.totalorder %s42, %s43
      %p55 = scmp.eq.s32.totalorder %s17, 1
      %p56 = por %p54, %p55
      %p58 = scmp.ne.s32.totalorder %s43, %s57
      %p59 = scmp.eq.s32.totalorder %s17, 0
      %p60 = por %p58, %p59
      %s61 = ssub.s32 %s11, %s18
      %p62 = scmp.eq.s32.totalorder %s61, 0
      %s64 = sadd.s32 %s63, 1
      %s65 = scalar_select %p62, %s63, %s64
      %p68 = pneg %p62
      %p69 = scmp.eq.s32.totalorder %s11, 1
      %p70 = por %p68, %p69
      %p71 = scmp.ne.s32.totalorder %s63, %s66
      %p72 = scmp.eq.s32.totalorder %s11, 0
      %p73 = por %p71, %p72
      %p74 = scmp.ne.s32.totalorder %s63, %s66
      %p75 = scmp.eq.s32.totalorder %s16, 1
      %p76 = por %p74, %p75
      %p77 = scmp.ne.s32.totalorder %s66, %s67
      %p78 = scmp.eq.s32.totalorder %s16, 0
      %p79 = por %p77, %p78
      %p80 = scmp.ne.s32.totalorder %s66, %s67
      %p81 = scmp.eq.s32.totalorder %s17, 1
      %p82 = por %p80, %p81
      %p84 = scmp.ne.s32.totalorder %s67, %s83
      %p85 = scmp.eq.s32.totalorder %s17, 0
      %p86 = por %p84, %p85
      %s87 = ssub.s32 %s11, %s18
      %p88 = scmp.eq.s32.totalorder %s87, 0
      %s90 = sadd.s32 %s89, 1
      %s91 = scalar_select %p88, %s89, %s90
      %p94 = pneg %p88
      %p95 = scmp.eq.s32.totalorder %s11, 1
      %p96 = por %p94, %p95
      %p97 = scmp.ne.s32.totalorder %s89, %s92
      %p98 = scmp.eq.s32.totalorder %s11, 0
      %p99 = por %p97, %p98
      %p100 = scmp.ne.s32.totalorder %s89, %s92
      %p101 = scmp.eq.s32.totalorder %s16, 1
      %p102 = por %p100, %p101
      %p103 = scmp.ne.s32.totalorder %s92, %s93
      %p104 = scmp.eq.s32.totalorder %s16, 0
      %p105 = por %p103, %p104
      %p106 = scmp.ne.s32.totalorder %s92, %s93
      %p107 = scmp.eq.s32.totalorder %s17, 1
      %p108 = por %p106, %p107
      %p110 = scmp.ne.s32.totalorder %s93, %s109
      %p111 = scmp.eq.s32.totalorder %s17, 0
      %p112 = por %p110, %p111
      %p113 = scmp.le.s32.totalorder 1, %s11
      %p114 = scmp.lt.s32.totalorder %s11, 3
      %p115 = pnand %p113, %p114
      %p116 = pneg %p115
      // Predicated region
      $region9: #{sa_layer_pallas.1} parent=5 // pred_check
        _
      $region10: #{sa_layer_pallas.1} parent=5 // pred_check_branch
        %118 = sbr.rel (%p115) target = $region12
      $region11: #{sa_layer_pallas.1} parent=5 // pred_region
        %s119 = ssub.s32 %s11, 1
        // Predicated region
        $region13: #{sa_layer_pallas.1} parent=11 // pred_check
          %p120 = pneg %p32
        $region14: #{sa_layer_pallas.1} parent=11 // pred_check_branch
          %122 = sbr.rel (%p120) target = $region16
        $region15: #{sa_layer_pallas.1} parent=11 // pred_region
          %s124 = ssub.s32 16384, 16384
          %125 = vsyncadd [#allocation4], %s124
          %s126 = sshll.u32 [#allocation3], 4
          %s127 = int_to_ptr.vmem [resolvable:$true] %s126
          %132 = dma.hbm_to_vmem [thread:$0]  %s0, 16384, %s127, [#allocation4], 256, 256, 16
        $region16: #{sa_layer_pallas.1} parent=11 // pred_fallthru
          _
        // Predicated region
        $region17: #{sa_layer_pallas.1} parent=11 // pred_check
          %p133 = pneg %p53
        $region18: #{sa_layer_pallas.1} parent=11 // pred_check_branch
          %135 = sbr.rel (%p133) target = $region20
        $region19: #{sa_layer_pallas.1} parent=11 // pred_region
          _
        $region20: #{sa_layer_pallas.1} parent=11 // pred_fallthru
          _
      $region12: #{sa_layer_pallas.1} parent=5 // pred_fallthru
        _
      %p136 = scmp.lt.s32.totalorder %s11, 2
      // Predicated region
      $region21: #{sa_layer_pallas.1} parent=5 // pred_check
        %p137 = pneg %p136
      $region22: #{sa_layer_pallas.1} parent=5 // pred_check_branch
        %139 = sbr.rel (%p137) target = $region24
      $region23: #{sa_layer_pallas.1} parent=5 // pred_region
        // Predicated region
        $region25: #{sa_layer_pallas.1} parent=23 // pred_check
          %p140 = pneg %p73
        $region26: #{sa_layer_pallas.1} parent=23 // pred_check_branch
          %142 = sbr.rel (%p140) target = $region28
        $region27: #{sa_layer_pallas.1} parent=23 // pred_region
          %p143 = scmp.lt.s32.totalorder %s11, 1
          %s144 = scalar_select %p143, %s11, 1
          %s145 = smul.addr %s144, 2
          %s146 = smul.addr %s145, 4
          %s147 = scalar_lea.vmem %s2, %s146
        $region28: #{sa_layer_pallas.1} parent=23 // pred_fallthru
          _
      $region24: #{sa_layer_pallas.1} parent=5 // pred_fallthru
        _
      %p148 = scmp.le.s32.totalorder 1, %s11
      %p149 = scmp.lt.s32.totalorder %s11, 3
      %p150 = pnand %p148, %p149
      %p151 = pneg %p150
      // Predicated region
      $region29: #{sa_layer_pallas.1} parent=5 // pred_check
        _
      $region30: #{sa_layer_pallas.1} parent=5 // pred_check_branch
        %153 = sbr.rel (%p150) target = $region32
      $region31: #{sa_layer_pallas.1} parent=5 // pred_region
        %s154 = ssub.s32 %s11, 1
        // Predicated region
        $region33: #{sa_layer_pallas.1} parent=31 // pred_check
          %p155 = pneg %p32
        $region34: #{sa_layer_pallas.1} parent=31 // pred_check_branch
          %157 = sbr.rel (%p155) target = $region36
        $region35: #{sa_layer_pallas.1} parent=31 // pred_region
          %158 = dma.done [#allocation4], 16384
        $region36: #{sa_layer_pallas.1} parent=31 // pred_fallthru
          _
        %p159 = pneg %p32
        %p160 = pneg %p29
        %p161 = pneg %p53
        %p162 = pneg %p50
        %p163 = scmp.lt.s32.totalorder %s16, 1
        %s164 = scalar_select %p163, %s16, 1
        %s165 = smul.addr %s164, 2
        %s166 = smul.addr %s165, 4
        %s167 = scalar_lea.vmem %s2, %s166
        %p168 = pneg %p79
        %p169 = pneg %p76
        %p170 = pneg %p105
        %p171 = pneg %p102
        %p172 = scmp.lt.s32.totalorder %s16, 1
        %s173 = scalar_select %p172, %s16, 1
        %s174 = smul.addr %s173, 2
        %s175 = smul.addr %s174, 4
        %s176 = scalar_lea.vmem %s3, %s175
        %p177 = scmp.lt.s32.totalorder %s16, 1
        %s178 = scalar_select %p177, %s16, 1
        %s179 = smul.addr %s178, 2
        %s180 = smul.addr %s179, 4
        %s181 = scalar_lea.vmem %s2, %s180
        %p182 = scmp.lt.s32.totalorder %s16, 1
        %s183 = scalar_select %p182, %s16, 1
        %s184 = smul.addr %s183, 2
        %s185 = smul.addr %s184, 4
        %s186 = scalar_lea.vmem %s3, %s185
        %v187 = vld [vmem:[%s181] sm:$0xff]
        %v189 = vcombine.high %v187, %v187
        %vm191 = vcmask 1043456
        %v192 = vsel %vm191, %v187, 0.0
        %v193 = vrot.slane %v192, 4
        %v194 = vadd.f32 %v192, %v193
        %v195 = vrot.slane %v194, 2
        %v196 = vadd.f32 %v194, %v195
        %v197 = vrot.slane %v196, 1
        %v198 = vadd.f32 %v196, %v197
        %v199 = vsel %vm191, %v189, 0.0
        %v200 = vrot.slane %v199, 4
        %v201 = vadd.f32 %v199, %v200
        %v202 = vrot.slane %v201, 2
        %v203 = vadd.f32 %v201, %v202
        %v204 = vrot.slane %v203, 1
        %v205 = vadd.f32 %v203, %v204
        %v206 = vsel %vm191, %v187, -inf
        %v207 = vrot.slane %v206, 4
        %v208 = vmax.f32 %v206, %v207
        %v209 = vrot.slane %v208, 2
        %v210 = vmax.f32 %v208, %v209
        %v211 = vrot.slane %v210, 1
        %v212 = vmax.f32 %v210, %v211
        %v213 = vsel %vm191, %v189, -inf
        %v214 = vrot.slane %v213, 4
        %v215 = vmax.f32 %v213, %v214
        %v216 = vrot.slane %v215, 2
        %v217 = vmax.f32 %v215, %v216
        %v218 = vrot.slane %v217, 1
        %v219 = vmax.f32 %v217, %v218
        %v220 = vlaneseq
        %v221 = vshrl.u32 %v220, 7
        %v222 = vsub.s32 0, %v221
        %v223 = vrot.slane %v198, %v222
        %v224 = vlaneseq
        %v225 = vshrl.u32 %v224, 7
        %v226 = vsub.s32 0, %v225
        %v227 = vrot.slane %v205, %v226
        %v228 = vlaneseq
        %v229 = vshrl.u32 %v228, 7
        %v230 = vsub.s32 0, %v229
        %v231 = vrot.slane %v212, %v230
        %v232 = vlaneseq
        %v233 = vshrl.u32 %v232, 7
        %v234 = vsub.s32 0, %v233
        %v235 = vrot.slane %v219, %v234
        %v236 = vld [vmem:[#allocation3] sm:$0xff]
        %v237 = vld [vmem:[#allocation3 + $0x8] sm:$0xff]
        %v238 = vld [vmem:[#allocation3 + $0x10] sm:$0xff]
        %v239 = vld [vmem:[#allocation3 + $0x18] sm:$0xff]
        %v240 = vld [vmem:[#allocation3 + $0x20] sm:$0xff]
        %v241 = vld [vmem:[#allocation3 + $0x28] sm:$0xff]
        %v242 = vld [vmem:[#allocation3 + $0x30] sm:$0xff]
        %v243 = vld [vmem:[#allocation3 + $0x38] sm:$0xff]
        %v244 = vld [vmem:[#allocation3 + $0x40] sm:$0xff]
        %v245 = vld [vmem:[#allocation3 + $0x48] sm:$0xff]
        %v246 = vld [vmem:[#allocation3 + $0x50] sm:$0xff]
        %v247 = vld [vmem:[#allocation3 + $0x58] sm:$0xff]
        %v248 = vld [vmem:[#allocation3 + $0x60] sm:$0xff]
        %v249 = vld [vmem:[#allocation3 + $0x68] sm:$0xff]
        %v250 = vld [vmem:[#allocation3 + $0x70] sm:$0xff]
        %v251 = vld [vmem:[#allocation3 + $0x78] sm:$0xff]
        %v252 = vld [vmem:[#allocation3 + $0x80] sm:$0xff]
        %v253 = vld [vmem:[#allocation3 + $0x88] sm:$0xff]
        %v254 = vld [vmem:[#allocation3 + $0x90] sm:$0xff]
        %v255 = vld [vmem:[#allocation3 + $0x98] sm:$0xff]
        %v256 = vld [vmem:[#allocation3 + $0xa0] sm:$0xff]
        %v257 = vld [vmem:[#allocation3 + $0xa8] sm:$0xff]
        %v258 = vld [vmem:[#allocation3 + $0xb0] sm:$0xff]
        %v259 = vld [vmem:[#allocation3 + $0xb8] sm:$0xff]
        %v260 = vld [vmem:[#allocation3 + $0xc0] sm:$0xff]
        %v261 = vld [vmem:[#allocation3 + $0xc8] sm:$0xff]
        %v262 = vld [vmem:[#allocation3 + $0xd0] sm:$0xff]
        %v263 = vld [vmem:[#allocation3 + $0xd8] sm:$0xff]
        %v264 = vld [vmem:[#allocation3 + $0xe0] sm:$0xff]
        %v265 = vld [vmem:[#allocation3 + $0xe8] sm:$0xff]
        %v266 = vld [vmem:[#allocation3 + $0xf0] sm:$0xff]
        %v267 = vld [vmem:[#allocation3 + $0xf8] sm:$0xff]
        %v268 = vld [vmem:[#allocation3 + $0x100] sm:$0xff]
        %v269 = vld [vmem:[#allocation3 + $0x108] sm:$0xff]
        %v270 = vld [vmem:[#allocation3 + $0x110] sm:$0xff]
        %v271 = vld [vmem:[#allocation3 + $0x118] sm:$0xff]
        %v272 = vld [vmem:[#allocation3 + $0x120] sm:$0xff]
        %v273 = vld [vmem:[#allocation3 + $0x128] sm:$0xff]
        %v274 = vld [vmem:[#allocation3 + $0x130] sm:$0xff]
        %v275 = vld [vmem:[#allocation3 + $0x138] sm:$0xff]
        %v276 = vld [vmem:[#allocation3 + $0x140] sm:$0xff]
        %v277 = vld [vmem:[#allocation3 + $0x148] sm:$0xff]
        %v278 = vld [vmem:[#allocation3 + $0x150] sm:$0xff]
        %v279 = vld [vmem:[#allocation3 + $0x158] sm:$0xff]
        %v280 = vld [vmem:[#allocation3 + $0x160] sm:$0xff]
        %v281 = vld [vmem:[#allocation3 + $0x168] sm:$0xff]
        %v282 = vld [vmem:[#allocation3 + $0x170] sm:$0xff]
        %v283 = vld [vmem:[#allocation3 + $0x178] sm:$0xff]
        %v284 = vld [vmem:[#allocation3 + $0x180] sm:$0xff]
        %v285 = vld [vmem:[#allocation3 + $0x188] sm:$0xff]
        %v286 = vld [vmem:[#allocation3 + $0x190] sm:$0xff]
        %v287 = vld [vmem:[#allocation3 + $0x198] sm:$0xff]
        %v288 = vld [vmem:[#allocation3 + $0x1a0] sm:$0xff]
        %v289 = vld [vmem:[#allocation3 + $0x1a8] sm:$0xff]
        %v290 = vld [vmem:[#allocation3 + $0x1b0] sm:$0xff]
        %v291 = vld [vmem:[#allocation3 + $0x1b8] sm:$0xff]
        %v292 = vld [vmem:[#allocation3 + $0x1c0] sm:$0xff]
        %v293 = vld [vmem:[#allocation3 + $0x1c8] sm:$0xff]
        %v294 = vld [vmem:[#allocation3 + $0x1d0] sm:$0xff]
        %v295 = vld [vmem:[#allocation3 + $0x1d8] sm:$0xff]
        %v296 = vld [vmem:[#allocation3 + $0x1e0] sm:$0xff]
        %v297 = vld [vmem:[#allocation3 + $0x1e8] sm:$0xff]
        %v298 = vld [vmem:[#allocation3 + $0x1f0] sm:$0xff]
        %v299 = vld [vmem:[#allocation3 + $0x1f8] sm:$0xff]
        %v300 = vld [vmem:[#allocation3 + $0x200] sm:$0xff]
        %v301 = vld [vmem:[#allocation3 + $0x208] sm:$0xff]
        %v302 = vld [vmem:[#allocation3 + $0x210] sm:$0xff]
        %v303 = vld [vmem:[#allocation3 + $0x218] sm:$0xff]
        %v304 = vld [vmem:[#allocation3 + $0x220] sm:$0xff]
        %v305 = vld [vmem:[#allocation3 + $0x228] sm:$0xff]
        %v306 = vld [vmem:[#allocation3 + $0x230] sm:$0xff]
        %v307 = vld [vmem:[#allocation3 + $0x238] sm:$0xff]
        %v308 = vld [vmem:[#allocation3 + $0x240] sm:$0xff]
        %v309 = vld [vmem:[#allocation3 + $0x248] sm:$0xff]
        %v310 = vld [vmem:[#allocation3 + $0x250] sm:$0xff]
        %v311 = vld [vmem:[#allocation3 + $0x258] sm:$0xff]
        %v312 = vld [vmem:[#allocation3 + $0x260] sm:$0xff]
        %v313 = vld [vmem:[#allocation3 + $0x268] sm:$0xff]
        %v314 = vld [vmem:[#allocation3 + $0x270] sm:$0xff]
        %v315 = vld [vmem:[#allocation3 + $0x278] sm:$0xff]
        %v316 = vld [vmem:[#allocation3 + $0x280] sm:$0xff]
        %v317 = vld [vmem:[#allocation3 + $0x288] sm:$0xff]
        %v318 = vld [vmem:[#allocation3 + $0x290] sm:$0xff]
        %v319 = vld [vmem:[#allocation3 + $0x298] sm:$0xff]
        %v320 = vld [vmem:[#allocation3 + $0x2a0] sm:$0xff]
        %v321 = vld [vmem:[#allocation3 + $0x2a8] sm:$0xff]
        %v322 = vld [vmem:[#allocation3 + $0x2b0] sm:$0xff]
        %v323 = vld [vmem:[#allocation3 + $0x2b8] sm:$0xff]
        %v324 = vld [vmem:[#allocation3 + $0x2c0] sm:$0xff]
        %v325 = vld [vmem:[#allocation3 + $0x2c8] sm:$0xff]
        %v326 = vld [vmem:[#allocation3 + $0x2d0] sm:$0xff]
        %v327 = vld [vmem:[#allocation3 + $0x2d8] sm:$0xff]
        %v328 = vld [vmem:[#allocation3 + $0x2e0] sm:$0xff]
        %v329 = vld [vmem:[#allocation3 + $0x2e8] sm:$0xff]
        %v330 = vld [vmem:[#allocation3 + $0x2f0] sm:$0xff]
        %v331 = vld [vmem:[#allocation3 + $0x2f8] sm:$0xff]
        %v332 = vld [vmem:[#allocation3 + $0x300] sm:$0xff]
        %v333 = vld [vmem:[#allocation3 + $0x308] sm:$0xff]
        %v334 = vld [vmem:[#allocation3 + $0x310] sm:$0xff]
        %v335 = vld [vmem:[#allocation3 + $0x318] sm:$0xff]
        %v336 = vld [vmem:[#allocation3 + $0x320] sm:$0xff]
        %v337 = vld [vmem:[#allocation3 + $0x328] sm:$0xff]
        %v338 = vld [vmem:[#allocation3 + $0x330] sm:$0xff]
        %v339 = vld [vmem:[#allocation3 + $0x338] sm:$0xff]
        %v340 = vld [vmem:[#allocation3 + $0x340] sm:$0xff]
        %v341 = vld [vmem:[#allocation3 + $0x348] sm:$0xff]
        %v342 = vld [vmem:[#allocation3 + $0x350] sm:$0xff]
        %v343 = vld [vmem:[#allocation3 + $0x358] sm:$0xff]
        %v344 = vld [vmem:[#allocation3 + $0x360] sm:$0xff]
        %v345 = vld [vmem:[#allocation3 + $0x368] sm:$0xff]
        %v346 = vld [vmem:[#allocation3 + $0x370] sm:$0xff]
        %v347 = vld [vmem:[#allocation3 + $0x378] sm:$0xff]
        %v348 = vld [vmem:[#allocation3 + $0x380] sm:$0xff]
        %v349 = vld [vmem:[#allocation3 + $0x388] sm:$0xff]
        %v350 = vld [vmem:[#allocation3 + $0x390] sm:$0xff]
        %v351 = vld [vmem:[#allocation3 + $0x398] sm:$0xff]
        %v352 = vld [vmem:[#allocation3 + $0x3a0] sm:$0xff]
        %v353 = vld [vmem:[#allocation3 + $0x3a8] sm:$0xff]
        %v354 = vld [vmem:[#allocation3 + $0x3b0] sm:$0xff]
        %v355 = vld [vmem:[#allocation3 + $0x3b8] sm:$0xff]
        %v356 = vld [vmem:[#allocation3 + $0x3c0] sm:$0xff]
        %v357 = vld [vmem:[#allocation3 + $0x3c8] sm:$0xff]
        %v358 = vld [vmem:[#allocation3 + $0x3d0] sm:$0xff]
        %v359 = vld [vmem:[#allocation3 + $0x3d8] sm:$0xff]
        %v360 = vld [vmem:[#allocation3 + $0x3e0] sm:$0xff]
        %v361 = vld [vmem:[#allocation3 + $0x3e8] sm:$0xff]
        %v362 = vld [vmem:[#allocation3 + $0x3f0] sm:$0xff]
        %v363 = vld [vmem:[#allocation3 + $0x3f8] sm:$0xff]
        %s364 = sld [smem:[#allocation2]]
        %v365 = vstv %s364
        %v366 = vand.u32 %v237, 4294901760
        %367 = vmatprep.subr.mxu0 %v366
        %v368 = vand.u32 %v236, 4294901760
        %369 = vmatpush1.msra.mxu0 %v368
        %v370 = vand.u32 %v239, 4294901760
        %371 = vmatprep.subr.mxu0 %v370
        %v372 = vand.u32 %v238, 4294901760
        %373 = vmatpush1.msra.mxu0 %v372
        %v374 = vand.u32 %v241, 4294901760
        %375 = vmatprep.subr.mxu0 %v374
        %v376 = vand.u32 %v240, 4294901760
        %377 = vmatpush1.msra.mxu0 %v376
        %v378 = vand.u32 %v243, 4294901760
        %379 = vmatprep.subr.mxu0 %v378
        %v380 = vand.u32 %v242, 4294901760
        %381 = vmatpush1.msra.mxu0 %v380
        %v382 = vand.u32 %v245, 4294901760
        %383 = vmatprep.subr.mxu0 %v382
        %v384 = vand.u32 %v244, 4294901760
        %385 = vmatpush1.msra.mxu0 %v384
        %v386 = vand.u32 %v247, 4294901760
        %387 = vmatprep.subr.mxu0 %v386
        %v388 = vand.u32 %v246, 4294901760
        %389 = vmatpush1.msra.mxu0 %v388
        %v390 = vand.u32 %v249, 4294901760
        %391 = vmatprep.subr.mxu0 %v390
        %v392 = vand.u32 %v248, 4294901760
        %393 = vmatpush1.msra.mxu0 %v392
        %v394 = vand.u32 %v251, 4294901760
        %395 = vmatprep.subr.mxu0 %v394
        %v396 = vand.u32 %v250, 4294901760
        %397 = vmatpush1.msra.mxu0 %v396
        %v398 = vand.u32 %v253, 4294901760
        %399 = vmatprep.subr.mxu0 %v398
        %v400 = vand.u32 %v252, 4294901760
        %401 = vmatpush1.msra.mxu0 %v400
        %v402 = vand.u32 %v255, 4294901760
        %403 = vmatprep.subr.mxu0 %v402
        %v404 = vand.u32 %v254, 4294901760
        %405 = vmatpush1.msra.mxu0 %v404
        %v406 = vand.u32 %v257, 4294901760
        %407 = vmatprep.subr.mxu0 %v406
        %v408 = vand.u32 %v256, 4294901760
        %409 = vmatpush1.msra.mxu0 %v408
        %v410 = vand.u32 %v259, 4294901760
        %411 = vmatprep.subr.mxu0 %v410
        %v412 = vand.u32 %v258, 4294901760
        %413 = vmatpush1.msra.mxu0 %v412
        %v414 = vand.u32 %v261, 4294901760
        %415 = vmatprep.subr.mxu0 %v414
        %v416 = vand.u32 %v260, 4294901760
        %417 = vmatpush1.msra.mxu0 %v416
        %v418 = vand.u32 %v263, 4294901760
        %419 = vmatprep.subr.mxu0 %v418
        %v420 = vand.u32 %v262, 4294901760
        %421 = vmatpush1.msra.mxu0 %v420
        %v422 = vand.u32 %v265, 4294901760
        %423 = vmatprep.subr.mxu0 %v422
        %v424 = vand.u32 %v264, 4294901760
        %425 = vmatpush1.msra.mxu0 %v424
        %v426 = vand.u32 %v267, 4294901760
        %427 = vmatprep.subr.mxu0 %v426
        %v428 = vand.u32 %v266, 4294901760
        %429 = vmatpush1.msra.mxu0 %v428
        %v430 = vand.u32 %v269, 4294901760
        %431 = vmatprep.subr.mxu0 %v430
        %v432 = vand.u32 %v268, 4294901760
        %433 = vmatpush1.msra.mxu0 %v432
        %v434 = vand.u32 %v271, 4294901760
        %435 = vmatprep.subr.mxu0 %v434
        %v436 = vand.u32 %v270, 4294901760
        %437 = vmatpush1.msra.mxu0 %v436
        %v438 = vand.u32 %v273, 4294901760
        %439 = vmatprep.subr.mxu0 %v438
        %v440 = vand.u32 %v272, 4294901760
        %441 = vmatpush1.msra.mxu0 %v440
        %v442 = vand.u32 %v275, 4294901760
        %443 = vmatprep.subr.mxu0 %v442
        %v444 = vand.u32 %v274, 4294901760
        %445 = vmatpush1.msra.mxu0 %v444
        %v446 = vand.u32 %v277, 4294901760
        %447 = vmatprep.subr.mxu0 %v446
        %v448 = vand.u32 %v276, 4294901760
        %449 = vmatpush1.msra.mxu0 %v448
        %v450 = vand.u32 %v279, 4294901760
        %451 = vmatprep.subr.mxu0 %v450
        %v452 = vand.u32 %v278, 4294901760
        %453 = vmatpush1.msra.mxu0 %v452
        %v454 = vand.u32 %v281, 4294901760
        %455 = vmatprep.subr.mxu0 %v454
        %v456 = vand.u32 %v280, 4294901760
        %457 = vmatpush1.msra.mxu0 %v456
        %v458 = vand.u32 %v283, 4294901760
        %459 = vmatprep.subr.mxu0 %v458
        %v460 = vand.u32 %v282, 4294901760
        %461 = vmatpush1.msra.mxu0 %v460
        %v462 = vand.u32 %v285, 4294901760
        %463 = vmatprep.subr.mxu0 %v462
        %v464 = vand.u32 %v284, 4294901760
        %465 = vmatpush1.msra.mxu0 %v464
        %v466 = vand.u32 %v287, 4294901760
        %467 = vmatprep.subr.mxu0 %v466
        %v468 = vand.u32 %v286, 4294901760
        %469 = vmatpush1.msra.mxu0 %v468
        %v470 = vand.u32 %v289, 4294901760
        %471 = vmatprep.subr.mxu0 %v470
        %v472 = vand.u32 %v288, 4294901760
        %473 = vmatpush1.msra.mxu0 %v472
        %v474 = vand.u32 %v291, 4294901760
        %475 = vmatprep.subr.mxu0 %v474
        %v476 = vand.u32 %v290, 4294901760
        %477 = vmatpush1.msra.mxu0 %v476
        %v478 = vand.u32 %v293, 4294901760
        %479 = vmatprep.subr.mxu0 %v478
        %v480 = vand.u32 %v292, 4294901760
        %481 = vmatpush1.msra.mxu0 %v480
        %v482 = vand.u32 %v295, 4294901760
        %483 = vmatprep.subr.mxu0 %v482
        %v484 = vand.u32 %v294, 4294901760
        %485 = vmatpush1.msra.mxu0 %v484
        %v486 = vand.u32 %v297, 4294901760
        %487 = vmatprep.subr.mxu0 %v486
        %v488 = vand.u32 %v296, 4294901760
        %489 = vmatpush1.msra.mxu0 %v488
        %v490 = vand.u32 %v299, 4294901760
        %491 = vmatprep.subr.mxu0 %v490
        %v492 = vand.u32 %v298, 4294901760
        %493 = vmatpush1.msra.mxu0 %v492
        %v494 = vand.u32 %v227, 4294901760
        %v495 = vsub.f32 %v227, %v494
        %v496 = vand.u32 %v495, 4294901760
        %v497 = vsub.f32 %v495, %v496
        %v498 = vand.u32 %v497, 4294901760
        %499 = vmatprep.mubr.f32.mxu0 %v498
        %v500 = vand.u32 %v223, 4294901760
        %v501 = vsub.f32 %v223, %v500
        %v502 = vand.u32 %v501, 4294901760
        %v503 = vsub.f32 %v501, %v502
        %v504 = vand.u32 %v503, 4294901760
        %505 = vmatmul.mubr.f32.gmra.mrb[0].mxu0 %v504
        %v506 = vpop.f32.mrb[0].mxu0
        %v507 = vadd.f32 %v365, %v506
        %v508 = vpop.f32.mrb[0].mxu0
        %v509 = vadd.f32 %v365, %v508
        %510 = vdwg.mxu0
        %v511 = vand.u32 %v237, 4294901760
        %v512 = vsub.f32 %v237, %v511
        %v513 = vand.u32 %v512, 4294901760
        %v514 = vsub.f32 %v512, %v513
        %v515 = vand.u32 %v514, 4294901760
        %516 = vmatprep.subr.mxu0 %v515
        %v517 = vand.u32 %v236, 4294901760
        %v518 = vsub.f32 %v236, %v517
        %v519 = vand.u32 %v518, 4294901760
        %v520 = vsub.f32 %v518, %v519
        %v521 = vand.u32 %v520, 4294901760
        %522 = vmatpush1.msra.mxu0 %v521
        %v523 = vand.u32 %v239, 4294901760
        %v524 = vsub.f32 %v239, %v523
        %v525 = vand.u32 %v524, 4294901760
        %v526 = vsub.f32 %v524, %v525
        %v527 = vand.u32 %v526, 4294901760
        %528 = vmatprep.subr.mxu0 %v527
        %v529 = vand.u32 %v238, 4294901760
        %v530 = vsub.f32 %v238, %v529
        %v531 = vand.u32 %v530, 4294901760
        %v532 = vsub.f32 %v530, %v531
        %v533 = vand.u32 %v532, 4294901760
        %534 = vmatpush1.msra.mxu0 %v533
        %v535 = vand.u32 %v241, 4294901760
        %v536 = vsub.f32 %v241, %v535
        %v537 = vand.u32 %v536, 4294901760
        %v538 = vsub.f32 %v536, %v537
        %v539 = vand.u32 %v538, 4294901760
        %540 = vmatprep.subr.mxu0 %v539
        %v541 = vand.u32 %v240, 4294901760
        %v542 = vsub.f32 %v240, %v541
        %v543 = vand.u32 %v542, 4294901760
        %v544 = vsub.f32 %v542, %v543
        %v545 = vand.u32 %v544, 4294901760
        %546 = vmatpush1.msra.mxu0 %v545
        %v547 = vand.u32 %v243, 4294901760
        %v548 = vsub.f32 %v243, %v547
        %v549 = vand.u32 %v548, 4294901760
        %v550 = vsub.f32 %v548, %v549
        %v551 = vand.u32 %v550, 4294901760
        %552 = vmatprep.subr.mxu0 %v551
        %v553 = vand.u32 %v242, 4294901760
        %v554 = vsub.f32 %v242, %v553
        %v555 = vand.u32 %v554, 4294901760
        %v556 = vsub.f32 %v554, %v555
        %v557 = vand.u32 %v556, 4294901760
        %558 = vmatpush1.msra.mxu0 %v557
        %v559 = vand.u32 %v245, 4294901760
        %v560 = vsub.f32 %v245, %v559
        %v561 = vand.u32 %v560, 4294901760
        %v562 = vsub.f32 %v560, %v561
        %v563 = vand.u32 %v562, 4294901760
        %564 = vmatprep.subr.mxu0 %v563
        %v565 = vand.u32 %v244, 4294901760
        %v566 = vsub.f32 %v244, %v565
        %v567 = vand.u32 %v566, 4294901760
        %v568 = vsub.f32 %v566, %v567
        %v569 = vand.u32 %v568, 4294901760
        %570 = vmatpush1.msra.mxu0 %v569
        %v571 = vand.u32 %v247, 4294901760
        %v572 = vsub.f32 %v247, %v571
        %v573 = vand.u32 %v572, 4294901760
        %v574 = vsub.f32 %v572, %v573
        %v575 = vand.u32 %v574, 4294901760
        %576 = vmatprep.subr.mxu0 %v575
        %v577 = vand.u32 %v246, 4294901760
        %v578 = vsub.f32 %v246, %v577
        %v579 = vand.u32 %v578, 4294901760
        %v580 = vsub.f32 %v578, %v579
        %v581 = vand.u32 %v580, 4294901760
        %582 = vmatpush1.msra.mxu0 %v581
        %v583 = vand.u32 %v249, 4294901760
        %v584 = vsub.f32 %v249, %v583
        %v585 = vand.u32 %v584, 4294901760
        %v586 = vsub.f32 %v584, %v585
        %v587 = vand.u32 %v586, 4294901760
        %588 = vmatprep.subr.mxu0 %v587
        %v589 = vand.u32 %v248, 4294901760
        %v590 = vsub.f32 %v248, %v589
        %v591 = vand.u32 %v590, 4294901760
        %v592 = vsub.f32 %v590, %v591
        %v593 = vand.u32 %v592, 4294901760
        %594 = vmatpush1.msra.mxu0 %v593
        %v595 = vand.u32 %v251, 4294901760
        %v596 = vsub.f32 %v251, %v595
        %v597 = vand.u32 %v596, 4294901760
        %v598 = vsub.f32 %v596, %v597
        %v599 = vand.u32 %v598, 4294901760
        %600 = vmatprep.subr.mxu0 %v599
        %v601 = vand.u32 %v250, 4294901760
        %v602 = vsub.f32 %v250, %v601
        %v603 = vand.u32 %v602, 4294901760
        %v604 = vsub.f32 %v602, %v603
        %v605 = vand.u32 %v604, 4294901760
        %606 = vmatpush1.msra.mxu0 %v605
        %v607 = vand.u32 %v253, 4294901760
        %v608 = vsub.f32 %v253, %v607
        %v609 = vand.u32 %v608, 4294901760
        %v610 = vsub.f32 %v608, %v609
        %v611 = vand.u32 %v610, 4294901760
        %612 = vmatprep.subr.mxu0 %v611
        %v613 = vand.u32 %v252, 4294901760
        %v614 = vsub.f32 %v252, %v613
        %v615 = vand.u32 %v614, 4294901760
        %v616 = vsub.f32 %v614, %v615
        %v617 = vand.u32 %v616, 4294901760
        %618 = vmatpush1.msra.mxu0 %v617
        %v619 = vand.u32 %v255, 4294901760
        %v620 = vsub.f32 %v255, %v619
        %v621 = vand.u32 %v620, 4294901760
        %v622 = vsub.f32 %v620, %v621
        %v623 = vand.u32 %v622, 4294901760
        %624 = vmatprep.subr.mxu0 %v623
        %v625 = vand.u32 %v254, 4294901760
        %v626 = vsub.f32 %v254, %v625
        %v627 = vand.u32 %v626, 4294901760
        %v628 = vsub.f32 %v626, %v627
        %v629 = vand.u32 %v628, 4294901760
        %630 = vmatpush1.msra.mxu0 %v629
        %v631 = vand.u32 %v257, 4294901760
        %v632 = vsub.f32 %v257, %v631
        %v633 = vand.u32 %v632, 4294901760
        %v634 = vsub.f32 %v632, %v633
        %v635 = vand.u32 %v634, 4294901760
        %636 = vmatprep.subr.mxu0 %v635
        %v637 = vand.u32 %v256, 4294901760
        %v638 = vsub.f32 %v256, %v637
        %v639 = vand.u32 %v638, 4294901760
        %v640 = vsub.f32 %v638, %v639
        %v641 = vand.u32 %v640, 4294901760
        %642 = vmatpush1.msra.mxu0 %v641
        %v643 = vand.u32 %v259, 4294901760
        %v644 = vsub.f32 %v259, %v643
        %v645 = vand.u32 %v644, 4294901760
        %v646 = vsub.f32 %v644, %v645
        %v647 = vand.u32 %v646, 4294901760
        %648 = vmatprep.subr.mxu0 %v647
        %v649 = vand.u32 %v258, 4294901760
        %v650 = vsub.f32 %v258, %v649
        %v651 = vand.u32 %v650, 4294901760
        %v652 = vsub.f32 %v650, %v651
        %v653 = vand.u32 %v652, 4294901760
        %654 = vmatpush1.msra.mxu0 %v653
        %v655 = vand.u32 %v261, 4294901760
        %v656 = vsub.f32 %v261, %v655
        %v657 = vand.u32 %v656, 4294901760
        %v658 = vsub.f32 %v656, %v657
        %v659 = vand.u32 %v658, 4294901760
        %660 = vmatprep.subr.mxu0 %v659
        %v661 = vand.u32 %v260, 4294901760
        %v662 = vsub.f32 %v260, %v661
        %v663 = vand.u32 %v662, 4294901760
        %v664 = vsub.f32 %v662, %v663
        %v665 = vand.u32 %v664, 4294901760
        %666 = vmatpush1.msra.mxu0 %v665
        %v667 = vand.u32 %v263, 4294901760
        %v668 = vsub.f32 %v263, %v667
        %v669 = vand.u32 %v668, 4294901760
        %v670 = vsub.f32 %v668, %v669
        %v671 = vand.u32 %v670, 4294901760
        %672 = vmatprep.subr.mxu0 %v671
        %v673 = vand.u32 %v262, 4294901760
        %v674 = vsub.f32 %v262, %v673
        %v675 = vand.u32 %v674, 4294901760
        %v676 = vsub.f32 %v674, %v675
        %v677 = vand.u32 %v676, 4294901760
        %678 = vmatpush1.msra.mxu0 %v677
        %v679 = vand.u32 %v265, 4294901760
        %v680 = vsub.f32 %v265, %v679
        %v681 = vand.u32 %v680, 4294901760
        %v682 = vsub.f32 %v680, %v681
        %v683 = vand.u32 %v682, 4294901760
        %684 = vmatprep.subr.mxu0 %v683
        %v685 = vand.u32 %v264, 4294901760
        %v686 = vsub.f32 %v264, %v685
        %v687 = vand.u32 %v686, 4294901760
        %v688 = vsub.f32 %v686, %v687
        %v689 = vand.u32 %v688, 4294901760
        %690 = vmatpush1.msra.mxu0 %v689
        %v691 = vand.u32 %v267, 4294901760
        %v692 = vsub.f32 %v267, %v691
        %v693 = vand.u32 %v692, 4294901760
        %v694 = vsub.f32 %v692, %v693
        %v695 = vand.u32 %v694, 4294901760
        %696 = vmatprep.subr.mxu0 %v695
        %v697 = vand.u32 %v266, 4294901760
        %v698 = vsub.f32 %v266, %v697
        %v699 = vand.u32 %v698, 4294901760
        %v700 = vsub.f32 %v698, %v699
        %v701 = vand.u32 %v700, 4294901760
        %702 = vmatpush1.msra.mxu0 %v701
        %v703 = vand.u32 %v269, 4294901760
        %v704 = vsub.f32 %v269, %v703
        %v705 = vand.u32 %v704, 4294901760
        %v706 = vsub.f32 %v704, %v705
        %v707 = vand.u32 %v706, 4294901760
        %708 = vmatprep.subr.mxu0 %v707
        %v709 = vand.u32 %v268, 4294901760
        %v710 = vsub.f32 %v268, %v709
        %v711 = vand.u32 %v710, 4294901760
        %v712 = vsub.f32 %v710, %v711
        %v713 = vand.u32 %v712, 4294901760
        %714 = vmatpush1.msra.mxu0 %v713
        %v715 = vand.u32 %v271, 4294901760
        %v716 = vsub.f32 %v271, %v715
        %v717 = vand.u32 %v716, 4294901760
        %v718 = vsub.f32 %v716, %v717
        %v719 = vand.u32 %v718, 4294901760
        %720 = vmatprep.subr.mxu0 %v719
        %v721 = vand.u32 %v270, 4294901760
        %v722 = vsub.f32 %v270, %v721
        %v723 = vand.u32 %v722, 4294901760
        %v724 = vsub.f32 %v722, %v723
        %v725 = vand.u32 %v724, 4294901760
        %726 = vmatpush1.msra.mxu0 %v725
        %v727 = vand.u32 %v273, 4294901760
        %v728 = vsub.f32 %v273, %v727
        %v729 = vand.u32 %v728, 4294901760
        %v730 = vsub.f32 %v728, %v729
        %v731 = vand.u32 %v730, 4294901760
        %732 = vmatprep.subr.mxu0 %v731
        %v733 = vand.u32 %v272, 4294901760
        %v734 = vsub.f32 %v272, %v733
        %v735 = vand.u32 %v734, 4294901760
        %v736 = vsub.f32 %v734, %v735
        %v737 = vand.u32 %v736, 4294901760
        %738 = vmatpush1.msra.mxu0 %v737
        %v739 = vand.u32 %v275, 4294901760
        %v740 = vsub.f32 %v275, %v739
        %v741 = vand.u32 %v740, 4294901760
        %v742 = vsub.f32 %v740, %v741
        %v743 = vand.u32 %v742, 4294901760
        %744 = vmatprep.subr.mxu0 %v743
        %v745 = vand.u32 %v274, 4294901760
        %v746 = vsub.f32 %v274, %v745
        %v747 = vand.u32 %v746, 4294901760
        %v748 = vsub.f32 %v746, %v747
        %v749 = vand.u32 %v748, 4294901760
        %750 = vmatpush1.msra.mxu0 %v749
        %v751 = vand.u32 %v277, 4294901760
        %v752 = vsub.f32 %v277, %v751
        %v753 = vand.u32 %v752, 4294901760
        %v754 = vsub.f32 %v752, %v753
        %v755 = vand.u32 %v754, 4294901760
        %756 = vmatprep.subr.mxu0 %v755
        %v757 = vand.u32 %v276, 4294901760
        %v758 = vsub.f32 %v276, %v757
        %v759 = vand.u32 %v758, 4294901760
        %v760 = vsub.f32 %v758, %v759
        %v761 = vand.u32 %v760, 4294901760
        %762 = vmatpush1.msra.mxu0 %v761
        %v763 = vand.u32 %v279, 4294901760
        %v764 = vsub.f32 %v279, %v763
        %v765 = vand.u32 %v764, 4294901760
        %v766 = vsub.f32 %v764, %v765
        %v767 = vand.u32 %v766, 4294901760
        %768 = vmatprep.subr.mxu0 %v767
        %v769 = vand.u32 %v278, 4294901760
        %v770 = vsub.f32 %v278, %v769
        %v771 = vand.u32 %v770, 4294901760
        %v772 = vsub.f32 %v770, %v771
        %v773 = vand.u32 %v772, 4294901760
        %774 = vmatpush1.msra.mxu0 %v773
        %v775 = vand.u32 %v281, 4294901760
        %v776 = vsub.f32 %v281, %v775
        %v777 = vand.u32 %v776, 4294901760
        %v778 = vsub.f32 %v776, %v777
        %v779 = vand.u32 %v778, 4294901760
        %780 = vmatprep.subr.mxu0 %v779
        %v781 = vand.u32 %v280, 4294901760
        %v782 = vsub.f32 %v280, %v781
        %v783 = vand.u32 %v782, 4294901760
        %v784 = vsub.f32 %v782, %v783
        %v785 = vand.u32 %v784, 4294901760
        %786 = vmatpush1.msra.mxu0 %v785
        %v787 = vand.u32 %v283, 4294901760
        %v788 = vsub.f32 %v283, %v787
        %v789 = vand.u32 %v788, 4294901760
        %v790 = vsub.f32 %v788, %v789
        %v791 = vand.u32 %v790, 4294901760
        %792 = vmatprep.subr.mxu0 %v791
        %v793 = vand.u32 %v282, 4294901760
        %v794 = vsub.f32 %v282, %v793
        %v795 = vand.u32 %v794, 4294901760
        %v796 = vsub.f32 %v794, %v795
        %v797 = vand.u32 %v796, 4294901760
        %798 = vmatpush1.msra.mxu0 %v797
        %v799 = vand.u32 %v285, 4294901760
        %v800 = vsub.f32 %v285, %v799
        %v801 = vand.u32 %v800, 4294901760
        %v802 = vsub.f32 %v800, %v801
        %v803 = vand.u32 %v802, 4294901760
        %804 = vmatprep.subr.mxu0 %v803
        %v805 = vand.u32 %v284, 4294901760
        %v806 = vsub.f32 %v284, %v805
        %v807 = vand.u32 %v806, 4294901760
        %v808 = vsub.f32 %v806, %v807
        %v809 = vand.u32 %v808, 4294901760
        %810 = vmatpush1.msra.mxu0 %v809
        %v811 = vand.u32 %v287, 4294901760
        %v812 = vsub.f32 %v287, %v811
        %v813 = vand.u32 %v812, 4294901760
        %v814 = vsub.f32 %v812, %v813
        %v815 = vand.u32 %v814, 4294901760
        %816 = vmatprep.subr.mxu0 %v815
        %v817 = vand.u32 %v286, 4294901760
        %v818 = vsub.f32 %v286, %v817
        %v819 = vand.u32 %v818, 4294901760
        %v820 = vsub.f32 %v818, %v819
        %v821 = vand.u32 %v820, 4294901760
        %822 = vmatpush1.msra.mxu0 %v821
        %v823 = vand.u32 %v289, 4294901760
        %v824 = vsub.f32 %v289, %v823
        %v825 = vand.u32 %v824, 4294901760
        %v826 = vsub.f32 %v824, %v825
        %v827 = vand.u32 %v826, 4294901760
        %828 = vmatprep.subr.mxu0 %v827
        %v829 = vand.u32 %v288, 4294901760
        %v830 = vsub.f32 %v288, %v829
        %v831 = vand.u32 %v830, 4294901760
        %v832 = vsub.f32 %v830, %v831
        %v833 = vand.u32 %v832, 4294901760
        %834 = vmatpush1.msra.mxu0 %v833
        %v835 = vand.u32 %v291, 4294901760
        %v836 = vsub.f32 %v291, %v835
        %v837 = vand.u32 %v836, 4294901760
        %v838 = vsub.f32 %v836, %v837
        %v839 = vand.u32 %v838, 4294901760
        %840 = vmatprep.subr.mxu0 %v839
        %v841 = vand.u32 %v290, 4294901760
        %v842 = vsub.f32 %v290, %v841
        %v843 = vand.u32 %v842, 4294901760
        %v844 = vsub.f32 %v842, %v843
        %v845 = vand.u32 %v844, 4294901760
        %846 = vmatpush1.msra.mxu0 %v845
        %v847 = vand.u32 %v293, 4294901760
        %v848 = vsub.f32 %v293, %v847
        %v849 = vand.u32 %v848, 4294901760
        %v850 = vsub.f32 %v848, %v849
        %v851 = vand.u32 %v850, 4294901760
        %852 = vmatprep.subr.mxu0 %v851
        %v853 = vand.u32 %v292, 4294901760
        %v854 = vsub.f32 %v292, %v853
        %v855 = vand.u32 %v854, 4294901760
        %v856 = vsub.f32 %v854, %v855
        %v857 = vand.u32 %v856, 4294901760
        %858 = vmatpush1.msra.mxu0 %v857
        %v859 = vand.u32 %v295, 4294901760
        %v860 = vsub.f32 %v295, %v859
        %v861 = vand.u32 %v860, 4294901760
        %v862 = vsub.f32 %v860, %v861
        %v863 = vand.u32 %v862, 4294901760
        %864 = vmatprep.subr.mxu0 %v863
        %v865 = vand.u32 %v294, 4294901760
        %v866 = vsub.f32 %v294, %v865
        %v867 = vand.u32 %v866, 4294901760
        %v868 = vsub.f32 %v866, %v867
        %v869 = vand.u32 %v868, 4294901760
        %870 = vmatpush1.msra.mxu0 %v869
        %v871 = vand.u32 %v297, 4294901760
        %v872 = vsub.f32 %v297, %v871
        %v873 = vand.u32 %v872, 4294901760
        %v874 = vsub.f32 %v872, %v873
        %v875 = vand.u32 %v874, 4294901760
        %876 = vmatprep.subr.mxu0 %v875
        %v877 = vand.u32 %v296, 4294901760
        %v878 = vsub.f32 %v296, %v877
        %v879 = vand.u32 %v878, 4294901760
        %v880 = vsub.f32 %v878, %v879
        %v881 = vand.u32 %v880, 4294901760
        %882 = vmatpush1.msra.mxu0 %v881
        %v883 = vand.u32 %v299, 4294901760
        %v884 = vsub.f32 %v299, %v883
        %v885 = vand.u32 %v884, 4294901760
        %v886 = vsub.f32 %v884, %v885
        %v887 = vand.u32 %v886, 4294901760
        %888 = vmatprep.subr.mxu0 %v887
        %v889 = vand.u32 %v298, 4294901760
        %v890 = vsub.f32 %v298, %v889
        %v891 = vand.u32 %v890, 4294901760
        %v892 = vsub.f32 %v890, %v891
        %v893 = vand.u32 %v892, 4294901760
        %894 = vmatpush1.msra.mxu0 %v893
        %v895 = vand.u32 %v227, 4294901760
        %896 = vmatprep.mubr.f32.mxu0 %v895
        %v897 = vand.u32 %v223, 4294901760
        %898 = vmatmul.mubr.f32.gmra.mrb[0].mxu0 %v897
        %v899 = vpop.f32.mrb[0].mxu0
        %v900 = vadd.f32 %v507, %v899
        %v901 = vpop.f32.mrb[0].mxu0
        %v902 = vadd.f32 %v509, %v901
        %903 = vdwg.mxu0
        %v904 = vand.u32 %v237, 4294901760
        %v905 = vsub.f32 %v237, %v904
        %906 = vmatprep.subr.mxu0 %v905
        %v907 = vand.u32 %v236, 4294901760
        %v908 = vsub.f32 %v236, %v907
        %909 = vmatpush1.msra.mxu0 %v908
        %v910 = vand.u32 %v239, 4294901760
        %v911 = vsub.f32 %v239, %v910
        %912 = vmatprep.subr.mxu0 %v911
        %v913 = vand.u32 %v238, 4294901760
        %v914 = vsub.f32 %v238, %v913
        %915 = vmatpush1.msra.mxu0 %v914
        %v916 = vand.u32 %v241, 4294901760
        %v917 = vsub.f32 %v241, %v916
        %918 = vmatprep.subr.mxu0 %v917
        %v919 = vand.u32 %v240, 4294901760
        %v920 = vsub.f32 %v240, %v919
        %921 = vmatpush1.msra.mxu0 %v920
        %v922 = vand.u32 %v243, 4294901760
        %v923 = vsub.f32 %v243, %v922
        %924 = vmatprep.subr.mxu0 %v923
        %v925 = vand.u32 %v242, 4294901760
        %v926 = vsub.f32 %v242, %v925
        %927 = vmatpush1.msra.mxu0 %v926
        %v928 = vand.u32 %v245, 4294901760
        %v929 = vsub.f32 %v245, %v928
        %930 = vmatprep.subr.mxu0 %v929
        %v931 = vand.u32 %v244, 4294901760
        %v932 = vsub.f32 %v244, %v931
        %933 = vmatpush1.msra.mxu0 %v932
        %v934 = vand.u32 %v247, 4294901760
        %v935 = vsub.f32 %v247, %v934
        %936 = vmatprep.subr.mxu0 %v935
        %v937 = vand.u32 %v246, 4294901760
        %v938 = vsub.f32 %v246, %v937
        %939 = vmatpush1.msra.mxu0 %v938
        %v940 = vand.u32 %v249, 4294901760
        %v941 = vsub.f32 %v249, %v940
        %942 = vmatprep.subr.mxu0 %v941
        %v943 = vand.u32 %v248, 4294901760
        %v944 = vsub.f32 %v248, %v943
        %945 = vmatpush1.msra.mxu0 %v944
        %v946 = vand.u32 %v251, 4294901760
        %v947 = vsub.f32 %v251, %v946
        %948 = vmatprep.subr.mxu0 %v947
        %v949 = vand.u32 %v250, 4294901760
        %v950 = vsub.f32 %v250, %v949
        %951 = vmatpush1.msra.mxu0 %v950
        %v952 = vand.u32 %v253, 4294901760
        %v953 = vsub.f32 %v253, %v952
        %954 = vmatprep.subr.mxu0 %v953
        %v955 = vand.u32 %v252, 4294901760
        %v956 = vsub.f32 %v252, %v955
        %957 = vmatpush1.msra.mxu0 %v956
        %v958 = vand.u32 %v255, 4294901760
        %v959 = vsub.f32 %v255, %v958
        %960 = vmatprep.subr.mxu0 %v959
        %v961 = vand.u32 %v254, 4294901760
        %v962 = vsub.f32 %v254, %v961
        %963 = vmatpush1.msra.mxu0 %v962
        %v964 = vand.u32 %v257, 4294901760
        %v965 = vsub.f32 %v257, %v964
        %966 = vmatprep.subr.mxu0 %v965
        %v967 = vand.u32 %v256, 4294901760
        %v968 = vsub.f32 %v256, %v967
        %969 = vmatpush1.msra.mxu0 %v968
        %v970 = vand.u32 %v259, 4294901760
        %v971 = vsub.f32 %v259, %v970
        %972 = vmatprep.subr.mxu0 %v971
        %v973 = vand.u32 %v258, 4294901760
        %v974 = vsub.f32 %v258, %v973
        %975 = vmatpush1.msra.mxu0 %v974
        %v976 = vand.u32 %v261, 4294901760
        %v977 = vsub.f32 %v261, %v976
        %978 = vmatprep.subr.mxu0 %v977
        %v979 = vand.u32 %v260, 4294901760
        %v980 = vsub.f32 %v260, %v979
        %981 = vmatpush1.msra.mxu0 %v980
        %v982 = vand.u32 %v263, 4294901760
        %v983 = vsub.f32 %v263, %v982
        %984 = vmatprep.subr.mxu0 %v983
        %v985 = vand.u32 %v262, 4294901760
        %v986 = vsub.f32 %v262, %v985
        %987 = vmatpush1.msra.mxu0 %v986
        %v988 = vand.u32 %v265, 4294901760
        %v989 = vsub.f32 %v265, %v988
        %990 = vmatprep.subr.mxu0 %v989
        %v991 = vand.u32 %v264, 4294901760
        %v992 = vsub.f32 %v264, %v991
        %993 = vmatpush1.msra.mxu0 %v992
        %v994 = vand.u32 %v267, 4294901760
        %v995 = vsub.f32 %v267, %v994
        %996 = vmatprep.subr.mxu0 %v995
        %v997 = vand.u32 %v266, 4294901760
        %v998 = vsub.f32 %v266, %v997
        %999 = vmatpush1.msra.mxu0 %v998
        %v1000 = vand.u32 %v269, 4294901760
        %v1001 = vsub.f32 %v269, %v1000
        %1002 = vmatprep.subr.mxu0 %v1001
        %v1003 = vand.u32 %v268, 4294901760
        %v1004 = vsub.f32 %v268, %v1003
        %1005 = vmatpush1.msra.mxu0 %v1004
        %v1006 = vand.u32 %v271, 4294901760
        %v1007 = vsub.f32 %v271, %v1006
        %1008 = vmatprep.subr.mxu0 %v1007
        %v1009 = vand.u32 %v270, 4294901760
        %v1010 = vsub.f32 %v270, %v1009
        %1011 = vmatpush1.msra.mxu0 %v1010
        %v1012 = vand.u32 %v273, 4294901760
        %v1013 = vsub.f32 %v273, %v1012
        %1014 = vmatprep.subr.mxu0 %v1013
        %v1015 = vand.u32 %v272, 4294901760
        %v1016 = vsub.f32 %v272, %v1015
        %1017 = vmatpush1.msra.mxu0 %v1016
        %v1018 = vand.u32 %v275, 4294901760
        %v1019 = vsub.f32 %v275, %v1018
        %1020 = vmatprep.subr.mxu0 %v1019
        %v1021 = vand.u32 %v274, 4294901760
        %v1022 = vsub.f32 %v274, %v1021
        %1023 = vmatpush1.msra.mxu0 %v1022
        %v1024 = vand.u32 %v277, 4294901760
        %v1025 = vsub.f32 %v277, %v1024
        %1026 = vmatprep.subr.mxu0 %v1025
        %v1027 = vand.u32 %v276, 4294901760
        %v1028 = vsub.f32 %v276, %v1027
        %1029 = vmatpush1.msra.mxu0 %v1028
        %v1030 = vand.u32 %v279, 4294901760
        %v1031 = vsub.f32 %v279, %v1030
        %1032 = vmatprep.subr.mxu0 %v1031
        %v1033 = vand.u32 %v278, 4294901760
        %v1034 = vsub.f32 %v278, %v1033
        %1035 = vmatpush1.msra.mxu0 %v1034
        %v1036 = vand.u32 %v281, 4294901760
        %v1037 = vsub.f32 %v281, %v1036
        %1038 = vmatprep.subr.mxu0 %v1037
        %v1039 = vand.u32 %v280, 4294901760
        %v1040 = vsub.f32 %v280, %v1039
        %1041 = vmatpush1.msra.mxu0 %v1040
        %v1042 = vand.u32 %v283, 4294901760
        %v1043 = vsub.f32 %v283, %v1042
        %1044 = vmatprep.subr.mxu0 %v1043
        %v1045 = vand.u32 %v282, 4294901760
        %v1046 = vsub.f32 %v282, %v1045
        %1047 = vmatpush1.msra.mxu0 %v1046
        %v1048 = vand.u32 %v285, 4294901760
        %v1049 = vsub.f32 %v285, %v1048
        %1050 = vmatprep.subr.mxu0 %v1049
        %v1051 = vand.u32 %v284, 4294901760
        %v1052 = vsub.f32 %v284, %v1051
        %1053 = vmatpush1.msra.mxu0 %v1052
        %v1054 = vand.u32 %v287, 4294901760
        %v1055 = vsub.f32 %v287, %v1054
        %1056 = vmatprep.subr.mxu0 %v1055
        %v1057 = vand.u32 %v286, 4294901760
        %v1058 = vsub.f32 %v286, %v1057
        %1059 = vmatpush1.msra.mxu0 %v1058
        %v1060 = vand.u32 %v289, 4294901760
        %v1061 = vsub.f32 %v289, %v1060
        %1062 = vmatprep.subr.mxu0 %v1061
        %v1063 = vand.u32 %v288, 4294901760
        %v1064 = vsub.f32 %v288, %v1063
        %1065 = vmatpush1.msra.mxu0 %v1064
        %v1066 = vand.u32 %v291, 4294901760
        %v1067 = vsub.f32 %v291, %v1066
        %1068 = vmatprep.subr.mxu0 %v1067
        %v1069 = vand.u32 %v290, 4294901760
        %v1070 = vsub.f32 %v290, %v1069
        %1071 = vmatpush1.msra.mxu0 %v1070
        %v1072 = vand.u32 %v293, 4294901760
        %v1073 = vsub.f32 %v293, %v1072
        %1074 = vmatprep.subr.mxu0 %v1073
        %v1075 = vand.u32 %v292, 4294901760
        %v1076 = vsub.f32 %v292, %v1075
        %1077 = vmatpush1.msra.mxu0 %v1076
        %v1078 = vand.u32 %v295, 4294901760
        %v1079 = vsub.f32 %v295, %v1078
        %1080 = vmatprep.subr.mxu0 %v1079
        %v1081 = vand.u32 %v294, 4294901760
        %v1082 = vsub.f32 %v294, %v1081
        %1083 = vmatpush1.msra.mxu0 %v1082
        %v1084 = vand.u32 %v297, 4294901760
        %v1085 = vsub.f32 %v297, %v1084
        %1086 = vmatprep.subr.mxu0 %v1085
        %v1087 = vand.u32 %v296, 4294901760
        %v1088 = vsub.f32 %v296, %v1087
        %1089 = vmatpush1.msra.mxu0 %v1088
        %v1090 = vand.u32 %v299, 4294901760
        %v1091 = vsub.f32 %v299, %v1090
        %1092 = vmatprep.subr.mxu0 %v1091
        %v1093 = vand.u32 %v298, 4294901760
        %v1094 = vsub.f32 %v298, %v1093
        %1095 = vmatpush1.msra.mxu0 %v1094
        %v1096 = vand.u32 %v227, 4294901760
        %v1097 = vsub.f32 %v227, %v1096
        %1098 = vmatprep.mubr.f32.mxu0 %v1097
        %v1099 = vand.u32 %v223, 4294901760
        %v1100 = vsub.f32 %v223, %v1099
        %1101 = vmatmul.mubr.f32.gmra.mrb[0].mxu0 %v1100
        %v1102 = vpop.f32.mrb[0].mxu0
        %v1103 = vadd.f32 %v900, %v1102
        %v1104 = vpop.f32.mrb[0].mxu0
        %v1105 = vadd.f32 %v902, %v1104
        %1106 = vdwg.mxu0
        %v1107 = vand.u32 %v237, 4294901760
        %1108 = vmatprep.subr.mxu0 %v1107
        %v1109 = vand.u32 %v236, 4294901760
        %1110 = vmatpush1.msra.mxu0 %v1109
        %v1111 = vand.u32 %v239, 4294901760
        %1112 = vmatprep.subr.mxu0 %v1111
        %v1113 = vand.u32 %v238, 4294901760
        %1114 = vmatpush1.msra.mxu0 %v1113
        %v1115 = vand.u32 %v241, 4294901760
        %1116 = vmatprep.subr.mxu0 %v1115
        %v1117 = vand.u32 %v240, 4294901760
        %1118 = vmatpush1.msra.mxu0 %v1117
        %v1119 = vand.u32 %v243, 4294901760
        %1120 = vmatprep.subr.mxu0 %v1119
        %v1121 = vand.u32 %v242, 4294901760
        %1122 = vmatpush1.msra.mxu0 %v1121
        %v1123 = vand.u32 %v245, 4294901760
        %1124 = vmatprep.subr.mxu0 %v1123
        %v1125 = vand.u32 %v244, 4294901760
        %1126 = vmatpush1.msra.mxu0 %v1125
        %v1127 = vand.u32 %v247, 4294901760
        %1128 = vmatprep.subr.mxu0 %v1127
        %v1129 = vand.u32 %v246, 4294901760
        %1130 = vmatpush1.msra.mxu0 %v1129
        %v1131 = vand.u32 %v249, 4294901760
        %1132 = vmatprep.subr.mxu0 %v1131
        %v1133 = vand.u32 %v248, 4294901760
        %1134 = vmatpush1.msra.mxu0 %v1133
        %v1135 = vand.u32 %v251, 4294901760
        %1136 = vmatprep.subr.mxu0 %v1135
        %v1137 = vand.u32 %v250, 4294901760
        %1138 = vmatpush1.msra.mxu0 %v1137
        %v1139 = vand.u32 %v253, 4294901760
        %1140 = vmatprep.subr.mxu0 %v1139
        %v1141 = vand.u32 %v252, 4294901760
        %1142 = vmatpush1.msra.mxu0 %v1141
        %v1143 = vand.u32 %v255, 4294901760
        %1144 = vmatprep.subr.mxu0 %v1143
        %v1145 = vand.u32 %v254, 4294901760
        %1146 = vmatpush1.msra.mxu0 %v1145
        %v1147 = vand.u32 %v257, 4294901760
        %1148 = vmatprep.subr.mxu0 %v1147
        %v1149 = vand.u32 %v256, 4294901760
        %1150 = vmatpush1.msra.mxu0 %v1149
        %v1151 = vand.u32 %v259, 4294901760
        %1152 = vmatprep.subr.mxu0 %v1151
        %v1153 = vand.u32 %v258, 4294901760
        %1154 = vmatpush1.msra.mxu0 %v1153
        %v1155 = vand.u32 %v261, 4294901760
        %1156 = vmatprep.subr.mxu0 %v1155
        %v1157 = vand.u32 %v260, 4294901760
        %1158 = vmatpush1.msra.mxu0 %v1157
        %v1159 = vand.u32 %v263, 4294901760
        %1160 = vmatprep.subr.mxu0 %v1159
        %v1161 = vand.u32 %v262, 4294901760
        %1162 = vmatpush1.msra.mxu0 %v1161
        %v1163 = vand.u32 %v265, 4294901760
        %1164 = vmatprep.subr.mxu0 %v1163
        %v1165 = vand.u32 %v264, 4294901760
        %1166 = vmatpush1.msra.mxu0 %v1165
        %v1167 = vand.u32 %v267, 4294901760
        %1168 = vmatprep.subr.mxu0 %v1167
        %v1169 = vand.u32 %v266, 4294901760
        %1170 = vmatpush1.msra.mxu0 %v1169
        %v1171 = vand.u32 %v269, 4294901760
        %1172 = vmatprep.subr.mxu0 %v1171
        %v1173 = vand.u32 %v268, 4294901760
        %1174 = vmatpush1.msra.mxu0 %v1173
        %v1175 = vand.u32 %v271, 4294901760
        %1176 = vmatprep.subr.mxu0 %v1175
        %v1177 = vand.u32 %v270, 4294901760
        %1178 = vmatpush1.msra.mxu0 %v1177
        %v1179 = vand.u32 %v273, 4294901760
        %1180 = vmatprep.subr.mxu0 %v1179
        %v1181 = vand.u32 %v272, 4294901760
        %1182 = vmatpush1.msra.mxu0 %v1181
        %v1183 = vand.u32 %v275, 4294901760
        %1184 = vmatprep.subr.mxu0 %v1183
        %v1185 = vand.u32 %v274, 4294901760
        %1186 = vmatpush1.msra.mxu0 %v1185
        %v1187 = vand.u32 %v277, 4294901760
        %1188 = vmatprep.subr.mxu0 %v1187
        %v1189 = vand.u32 %v276, 4294901760
        %1190 = vmatpush1.msra.mxu0 %v1189
        %v1191 = vand.u32 %v279, 4294901760
        %1192 = vmatprep.subr.mxu0 %v1191
        %v1193 = vand.u32 %v278, 4294901760
        %1194 = vmatpush1.msra.mxu0 %v1193
        %v1195 = vand.u32 %v281, 4294901760
        %1196 = vmatprep.subr.mxu0 %v1195
        %v1197 = vand.u32 %v280, 4294901760
        %1198 = vmatpush1.msra.mxu0 %v1197
        %v1199 = vand.u32 %v283, 4294901760
        %1200 = vmatprep.subr.mxu0 %v1199
        %v1201 = vand.u32 %v282, 4294901760
        %1202 = vmatpush1.msra.mxu0 %v1201
        %v1203 = vand.u32 %v285, 4294901760
        %1204 = vmatprep.subr.mxu0 %v1203
        %v1205 = vand.u32 %v284, 4294901760
        %1206 = vmatpush1.msra.mxu0 %v1205
        %v1207 = vand.u32 %v287, 4294901760
        %1208 = vmatprep.subr.mxu0 %v1207
        %v1209 = vand.u32 %v286, 4294901760
        %1210 = vmatpush1.msra.mxu0 %v1209
        %v1211 = vand.u32 %v289, 4294901760
        %1212 = vmatprep.subr.mxu0 %v1211
        %v1213 = vand.u32 %v288, 4294901760
        %1214 = vmatpush1.msra.mxu0 %v1213
        %v1215 = vand.u32 %v291, 4294901760
        %1216 = vmatprep.subr.mxu0 %v1215
        %v1217 = vand.u32 %v290, 4294901760
        %1218 = vmatpush1.msra.mxu0 %v1217
        %v1219 = vand.u32 %v293, 4294901760
        %1220 = vmatprep.subr.mxu0 %v1219
        %v1221 = vand.u32 %v292, 4294901760
        %1222 = vmatpush1.msra.mxu0 %v1221
        %v1223 = vand.u32 %v295, 4294901760
        %1224 = vmatprep.subr.mxu0 %v1223
        %v1225 = vand.u32 %v294, 4294901760
        %1226 = vmatpush1.msra.mxu0 %v1225
        %v1227 = vand.u32 %v297, 4294901760
        %1228 = vmatprep.subr.mxu0 %v1227
        %v1229 = vand.u32 %v296, 4294901760
        %1230 = vmatpush1.msra.mxu0 %v1229
        %v1231 = vand.u32 %v299, 4294901760
        %1232 = vmatprep.subr.mxu0 %v1231
        %v1233 = vand.u32 %v298, 4294901760
        %1234 = vmatpush1.msra.mxu0 %v1233
        %v1235 = vand.u32 %v227, 4294901760
        %v1236 = vsub.f32 %v227, %v1235
        %v1237 = vand.u32 %v1236, 4294901760
        %1238 = vmatprep.mubr.f32.mxu0 %v1237
        %v1239 = vand.u32 %v223, 4294901760
        %v1240 = vsub.f32 %v223, %v1239
        %v1241 = vand.u32 %v1240, 4294901760
        %1242 = vmatmul.mubr.f32.gmra.mrb[0].mxu0 %v1241
        %v1243 = vpop.f32.mrb[0].mxu0
        %v1244 = vadd.f32 %v1103, %v1243
        %v1245 = vpop.f32.mrb[0].mxu0
        %v1246 = vadd.f32 %v1105, %v1245
        %1247 = vdwg.mxu0
        %v1248 = vand.u32 %v237, 4294901760
        %v1249 = vsub.f32 %v237, %v1248
        %v1250 = vand.u32 %v1249, 4294901760
        %1251 = vmatprep.subr.mxu0 %v1250
        %v1252 = vand.u32 %v236, 4294901760
        %v1253 = vsub.f32 %v236, %v1252
        %v1254 = vand.u32 %v1253, 4294901760
        %1255 = vmatpush1.msra.mxu0 %v1254
        %v1256 = vand.u32 %v239, 4294901760
        %v1257 = vsub.f32 %v239, %v1256
        %v1258 = vand.u32 %v1257, 4294901760
        %1259 = vmatprep.subr.mxu0 %v1258
        %v1260 = vand.u32 %v238, 4294901760
        %v1261 = vsub.f32 %v238, %v1260
        %v1262 = vand.u32 %v1261, 4294901760
        %1263 = vmatpush1.msra.mxu0 %v1262
        %v1264 = vand.u32 %v241, 4294901760
        %v1265 = vsub.f32 %v241, %v1264
        %v1266 = vand.u32 %v1265, 4294901760
        %1267 = vmatprep.subr.mxu0 %v1266
        %v1268 = vand.u32 %v240, 4294901760
        %v1269 = vsub.f32 %v240, %v1268
        %v1270 = vand.u32 %v1269, 4294901760
        %1271 = vmatpush1.msra.mxu0 %v1270
        %v1272 = vand.u32 %v243, 4294901760
        %v1273 = vsub.f32 %v243, %v1272
        %v1274 = vand.u32 %v1273, 4294901760
        %1275 = vmatprep.subr.mxu0 %v1274
        %v1276 = vand.u32 %v242, 4294901760
        %v1277 = vsub.f32 %v242, %v1276
        %v1278 = vand.u32 %v1277, 4294901760
        %1279 = vmatpush1.msra.mxu0 %v1278
        %v1280 = vand.u32 %v245, 4294901760
        %v1281 = vsub.f32 %v245, %v1280
        %v1282 = vand.u32 %v1281, 4294901760
        %1283 = vmatprep.subr.mxu0 %v1282
        %v1284 = vand.u32 %v244, 4294901760
        %v1285 = vsub.f32 %v244, %v1284
        %v1286 = vand.u32 %v1285, 4294901760
        %1287 = vmatpush1.msra.mxu0 %v1286
        %v1288 = vand.u32 %v247, 4294901760
        %v1289 = vsub.f32 %v247, %v1288
        %v1290 = vand.u32 %v1289, 4294901760
        %1291 = vmatprep.subr.mxu0 %v1290
        %v1292 = vand.u32 %v246, 4294901760
        %v1293 = vsub.f32 %v246, %v1292
        %v1294 = vand.u32 %v1293, 4294901760
        %1295 = vmatpush1.msra.mxu0 %v1294
        %v1296 = vand.u32 %v249, 4294901760
        %v1297 = vsub.f32 %v249, %v1296
        %v1298 = vand.u32 %v1297, 4294901760
        %1299 = vmatprep.subr.mxu0 %v1298
        %v1300 = vand.u32 %v248, 4294901760
        %v1301 = vsub.f32 %v248, %v1300
        %v1302 = vand.u32 %v1301, 4294901760
        %1303 = vmatpush1.msra.mxu0 %v1302
        %v1304 = vand.u32 %v251, 4294901760
        %v1305 = vsub.f32 %v251, %v1304
        %v1306 = vand.u32 %v1305, 4294901760
        %1307 = vmatprep.subr.mxu0 %v1306
        %v1308 = vand.u32 %v250, 4294901760
        %v1309 = vsub.f32 %v250, %v1308
        %v1310 = vand.u32 %v1309, 4294901760
        %1311 = vmatpush1.msra.mxu0 %v1310
        %v1312 = vand.u32 %v253, 4294901760
        %v1313 = vsub.f32 %v253, %v1312
        %v1314 = vand.u32 %v1313, 4294901760
        %1315 = vmatprep.subr.mxu0 %v1314
        %v1316 = vand.u32 %v252, 4294901760
        %v1317 = vsub.f32 %v252, %v1316
        %v1318 = vand.u32 %v1317, 4294901760
        %1319 = vmatpush1.msra.mxu0 %v1318
        %v1320 = vand.u32 %v255, 4294901760
        %v1321 = vsub.f32 %v255, %v1320
        %v1322 = vand.u32 %v1321, 4294901760
        %1323 = vmatprep.subr.mxu0 %v1322
        %v1324 = vand.u32 %v254, 4294901760
        %v1325 = vsub.f32 %v254, %v1324
        %v1326 = vand.u32 %v1325, 4294901760
        %1327 = vmatpush1.msra.mxu0 %v1326
        %v1328 = vand.u32 %v257, 4294901760
        %v1329 = vsub.f32 %v257, %v1328
        %v1330 = vand.u32 %v1329, 4294901760
        %1331 = vmatprep.subr.mxu0 %v1330
        %v1332 = vand.u32 %v256, 4294901760
        %v1333 = vsub.f32 %v256, %v1332
        %v1334 = vand.u32 %v1333, 4294901760
        %1335 = vmatpush1.msra.mxu0 %v1334
        %v1336 = vand.u32 %v259, 4294901760
        %v1337 = vsub.f32 %v259, %v1336
        %v1338 = vand.u32 %v1337, 4294901760
        %1339 = vmatprep.subr.mxu0 %v1338
        %v1340 = vand.u32 %v258, 4294901760
        %v1341 = vsub.f32 %v258, %v1340
        %v1342 = vand.u32 %v1341, 4294901760
        %1343 = vmatpush1.msra.mxu0 %v1342
        %v1344 = vand.u32 %v261, 4294901760
        %v1345 = vsub.f32 %v261, %v1344
        %v1346 = vand.u32 %v1345, 4294901760
        %1347 = vmatprep.subr.mxu0 %v1346
        %v1348 = vand.u32 %v260, 4294901760
        %v1349 = vsub.f32 %v260, %v1348
        %v1350 = vand.u32 %v1349, 4294901760
        %1351 = vmatpush1.msra.mxu0 %v1350
        %v1352 = vand.u32 %v263, 4294901760
        %v1353 = vsub.f32 %v263, %v1352
        %v1354 = vand.u32 %v1353, 4294901760
        %1355 = vmatprep.subr.mxu0 %v1354
        %v1356 = vand.u32 %v262, 4294901760
        %v1357 = vsub.f32 %v262, %v1356
        %v1358 = vand.u32 %v1357, 4294901760
        %1359 = vmatpush1.msra.mxu0 %v1358
        %v1360 = vand.u32 %v265, 4294901760
        %v1361 = vsub.f32 %v265, %v1360
        %v1362 = vand.u32 %v1361, 4294901760
        %1363 = vmatprep.subr.mxu0 %v1362
        %v1364 = vand.u32 %v264, 4294901760
        %v1365 = vsub.f32 %v264, %v1364
        %v1366 = vand.u32 %v1365, 4294901760
        %1367 = vmatpush1.msra.mxu0 %v1366
        %v1368 = vand.u32 %v267, 4294901760
        %v1369 = vsub.f32 %v267, %v1368
        %v1370 = vand.u32 %v1369, 4294901760
        %1371 = vmatprep.subr.mxu0 %v1370
        %v1372 = vand.u32 %v266, 4294901760
        %v1373 = vsub.f32 %v266, %v1372
        %v1374 = vand.u32 %v1373, 4294901760
        %1375 = vmatpush1.msra.mxu0 %v1374
        %v1376 = vand.u32 %v269, 4294901760
        %v1377 = vsub.f32 %v269, %v1376
        %v1378 = vand.u32 %v1377, 4294901760
        %1379 = vmatprep.subr.mxu0 %v1378
        %v1380 = vand.u32 %v268, 4294901760
        %v1381 = vsub.f32 %v268, %v1380
        %v1382 = vand.u32 %v1381, 4294901760
        %1383 = vmatpush1.msra.mxu0 %v1382
        %v1384 = vand.u32 %v271, 4294901760
        %v1385 = vsub.f32 %v271, %v1384
        %v1386 = vand.u32 %v1385, 4294901760
        %1387 = vmatprep.subr.mxu0 %v1386
        %v1388 = vand.u32 %v270, 4294901760
        %v1389 = vsub.f32 %v270, %v1388
        %v1390 = vand.u32 %v1389, 4294901760
        %1391 = vmatpush1.msra.mxu0 %v1390
        %v1392 = vand.u32 %v273, 4294901760
        %v1393 = vsub.f32 %v273, %v1392
        %v1394 = vand.u32 %v1393, 4294901760
        %1395 = vmatprep.subr.mxu0 %v1394
        %v1396 = vand.u32 %v272, 4294901760
        %v1397 = vsub.f32 %v272, %v1396
        %v1398 = vand.u32 %v1397, 4294901760
        %1399 = vmatpush1.msra.mxu0 %v1398
        %v1400 = vand.u32 %v275, 4294901760
        %v1401 = vsub.f32 %v275, %v1400
        %v1402 = vand.u32 %v1401, 4294901760
        %1403 = vmatprep.subr.mxu0 %v1402
        %v1404 = vand.u32 %v274, 4294901760
        %v1405 = vsub.f32 %v274, %v1404
        %v1406 = vand.u32 %v1405, 4294901760
        %1407 = vmatpush1.msra.mxu0 %v1406
        %v1408 = vand.u32 %v277, 4294901760
        %v1409 = vsub.f32 %v277, %v1408
        %v1410 = vand.u32 %v1409, 4294901760
        %1411 = vmatprep.subr.mxu0 %v1410
        %v1412 = vand.u32 %v276, 4294901760
        %v1413 = vsub.f32 %v276, %v1412
        %v1414 = vand.u32 %v1413, 4294901760
        %1415 = vmatpush1.msra.mxu0 %v1414
        %v1416 = vand.u32 %v279, 4294901760
        %v1417 = vsub.f32 %v279, %v1416
        %v1418 = vand.u32 %v1417, 4294901760
        %1419 = vmatprep.subr.mxu0 %v1418
        %v1420 = vand.u32 %v278, 4294901760
        %v1421 = vsub.f32 %v278, %v1420
        %v1422 = vand.u32 %v1421, 4294901760
        %1423 = vmatpush1.msra.mxu0 %v1422
        %v1424 = vand.u32 %v281, 4294901760
        %v1425 = vsub.f32 %v281, %v1424
        %v1426 = vand.u32 %v1425, 4294901760
        %1427 = vmatprep.subr.mxu0 %v1426
        %v1428 = vand.u32 %v280, 4294901760
        %v1429 = vsub.f32 %v280, %v1428
        %v1430 = vand.u32 %v1429, 4294901760
        %1431 = vmatpush1.msra.mxu0 %v1430
        %v1432 = vand.u32 %v283, 4294901760
        %v1433 = vsub.f32 %v283, %v1432
        %v1434 = vand.u32 %v1433, 4294901760
        %1435 = vmatprep.subr.mxu0 %v1434
        %v1436 = vand.u32 %v282, 4294901760
        %v1437 = vsub.f32 %v282, %v1436
        %v1438 = vand.u32 %v1437, 4294901760
        %1439 = vmatpush1.msra.mxu0 %v1438
        %v1440 = vand.u32 %v285, 4294901760
        %v1441 = vsub.f32 %v285, %v1440
        %v1442 = vand.u32 %v1441, 4294901760
        %1443 = vmatprep.subr.mxu0 %v1442
        %v1444 = vand.u32 %v284, 4294901760
        %v1445 = vsub.f32 %v284, %v1444
        %v1446 = vand.u32 %v1445, 4294901760
        %1447 = vmatpush1.msra.mxu0 %v1446
        %v1448 = vand.u32 %v287, 4294901760
        %v1449 = vsub.f32 %v287, %v1448
        %v1450 = vand.u32 %v1449, 4294901760
        %1451 = vmatprep.subr.mxu0 %v1450
        %v1452 = vand.u32 %v286, 4294901760
        %v1453 = vsub.f32 %v286, %v1452
        %v1454 = vand.u32 %v1453, 4294901760
        %1455 = vmatpush1.msra.mxu0 %v1454
        %v1456 = vand.u32 %v289, 4294901760
        %v1457 = vsub.f32 %v289, %v1456
        %v1458 = vand.u32 %v1457, 4294901760
        %1459 = vmatprep.subr.mxu0 %v1458
        %v1460 = vand.u32 %v288, 4294901760
        %v1461 = vsub.f32 %v288, %v1460
        %v1462 = vand.u32 %v1461, 4294901760
        %1463 = vmatpush1.msra.mxu0 %v1462
        %v1464 = vand.u32 %v291, 4294901760
        %v1465 = vsub.f32 %v291, %v1464
        %v1466 = vand.u32 %v1465, 4294901760
        %1467 = vmatprep.subr.mxu0 %v1466
        %v1468 = vand.u32 %v290, 4294901760
        %v1469 = vsub.f32 %v290, %v1468
        %v1470 = vand.u32 %v1469, 4294901760
        %1471 = vmatpush1.msra.mxu0 %v1470
        %v1472 = vand.u32 %v293, 4294901760
        %v1473 = vsub.f32 %v293, %v1472
        %v1474 = vand.u32 %v1473, 4294901760
        %1475 = vmatprep.subr.mxu0 %v1474
        %v1476 = vand.u32 %v292, 4294901760
        %v1477 = vsub.f32 %v292, %v1476
        %v1478 = vand.u32 %v1477, 4294901760
        %1479 = vmatpush1.msra.mxu0 %v1478
        %v1480 = vand.u32 %v295, 4294901760
        %v1481 = vsub.f32 %v295, %v1480
        %v1482 = vand.u32 %v1481, 4294901760
        %1483 = vmatprep.subr.mxu0 %v1482
        %v1484 = vand.u32 %v294, 4294901760
        %v1485 = vsub.f32 %v294, %v1484
        %v1486 = vand.u32 %v1485, 4294901760
        %1487 = vmatpush1.msra.mxu0 %v1486
        %v1488 = vand.u32 %v297, 4294901760
        %v1489 = vsub.f32 %v297, %v1488
        %v1490 = vand.u32 %v1489, 4294901760
        %1491 = vmatprep.subr.mxu0 %v1490
        %v1492 = vand.u32 %v296, 4294901760
        %v1493 = vsub.f32 %v296, %v1492
        %v1494 = vand.u32 %v1493, 4294901760
        %1495 = vmatpush1.msra.mxu0 %v1494
        %v1496 = vand.u32 %v299, 4294901760
        %v1497 = vsub.f32 %v299, %v1496
        %v1498 = vand.u32 %v1497, 4294901760
        %1499 = vmatprep.subr.mxu0 %v1498
        %v1500 = vand.u32 %v298, 4294901760
        %v1501 = vsub.f32 %v298, %v1500
        %v1502 = vand.u32 %v1501, 4294901760
        %1503 = vmatpush1.msra.mxu0 %v1502
        %v1504 = vand.u32 %v227, 4294901760
        %1505 = vmatprep.mubr.f32.mxu0 %v1504
        %v1506 = vand.u32 %v223, 4294901760
        %1507 = vmatmul.mubr.f32.gmra.mrb[0].mxu0 %v1506
        %v1508 = vpop.f32.mrb[0].mxu0
        %v1509 = vadd.f32 %v1244, %v1508
        %v1510 = vpop.f32.mrb[0].mxu0
        %v1511 = vadd.f32 %v1246, %v1510
        %1512 = vdwg.mxu0
        %v1513 = vand.u32 %v237, 4294901760
        %1514 = vmatprep.subr.mxu0 %v1513
        %v1515 = vand.u32 %v236, 4294901760
        %1516 = vmatpush1.msra.mxu0 %v1515
        %v1517 = vand.u32 %v239, 4294901760
        %1518 = vmatprep.subr.mxu0 %v1517
        %v1519 = vand.u32 %v238, 4294901760
        %1520 = vmatpush1.msra.mxu0 %v1519
        %v1521 = vand.u32 %v241, 4294901760
        %1522 = vmatprep.subr.mxu0 %v1521
        %v1523 = vand.u32 %v240, 4294901760
        %1524 = vmatpush1.msra.mxu0 %v1523
        %v1525 = vand.u32 %v243, 4294901760
        %1526 = vmatprep.subr.mxu0 %v1525
        %v1527 = vand.u32 %v242, 4294901760
        %1528 = vmatpush1.msra.mxu0 %v1527
        %v1529 = vand.u32 %v245, 4294901760
        %1530 = vmatprep.subr.mxu0 %v1529
        %v1531 = vand.u32 %v244, 4294901760
        %1532 = vmatpush1.msra.mxu0 %v1531
        %v1533 = vand.u32 %v247, 4294901760
        %1534 = vmatprep.subr.mxu0 %v1533
        %v1535 = vand.u32 %v246, 4294901760
        %1536 = vmatpush1.msra.mxu0 %v1535
        %v1537 = vand.u32 %v249, 4294901760
        %1538 = vmatprep.subr.mxu0 %v1537
        %v1539 = vand.u32 %v248, 4294901760
        %1540 = vmatpush1.msra.mxu0 %v1539
        %v1541 = vand.u32 %v251, 4294901760
        %1542 = vmatprep.subr.mxu0 %v1541
        %v1543 = vand.u32 %v250, 4294901760
        %1544 = vmatpush1.msra.mxu0 %v1543
        %v1545 = vand.u32 %v253, 4294901760
        %1546 = vmatprep.subr.mxu0 %v1545
        %v1547 = vand.u32 %v252, 4294901760
        %1548 = vmatpush1.msra.mxu0 %v1547
        %v1549 = vand.u32 %v255, 4294901760
        %1550 = vmatprep.subr.mxu0 %v1549
        %v1551 = vand.u32 %v254, 4294901760
        %1552 = vmatpush1.msra.mxu0 %v1551
        %v1553 = vand.u32 %v257, 4294901760
        %1554 = vmatprep.subr.mxu0 %v1553
        %v1555 = vand.u32 %v256, 4294901760
        %1556 = vmatpush1.msra.mxu0 %v1555
        %v1557 = vand.u32 %v259, 4294901760
        %1558 = vmatprep.subr.mxu0 %v1557
        %v1559 = vand.u32 %v258, 4294901760
        %1560 = vmatpush1.msra.mxu0 %v1559
        %v1561 = vand.u32 %v261, 4294901760
        %1562 = vmatprep.subr.mxu0 %v1561
        %v1563 = vand.u32 %v260, 4294901760
        %1564 = vmatpush1.msra.mxu0 %v1563
        %v1565 = vand.u32 %v263, 4294901760
        %1566 = vmatprep.subr.mxu0 %v1565
        %v1567 = vand.u32 %v262, 4294901760
        %1568 = vmatpush1.msra.mxu0 %v1567
        %v1569 = vand.u32 %v265, 4294901760
        %1570 = vmatprep.subr.mxu0 %v1569
        %v1571 = vand.u32 %v264, 4294901760
        %1572 = vmatpush1.msra.mxu0 %v1571
        %v1573 = vand.u32 %v267, 4294901760
        %1574 = vmatprep.subr.mxu0 %v1573
        %v1575 = vand.u32 %v266, 4294901760
        %1576 = vmatpush1.msra.mxu0 %v1575
        %v1577 = vand.u32 %v269, 4294901760
        %1578 = vmatprep.subr.mxu0 %v1577
        %v1579 = vand.u32 %v268, 4294901760
        %1580 = vmatpush1.msra.mxu0 %v1579
        %v1581 = vand.u32 %v271, 4294901760
        %1582 = vmatprep.subr.mxu0 %v1581
        %v1583 = vand.u32 %v270, 4294901760
        %1584 = vmatpush1.msra.mxu0 %v1583
        %v1585 = vand.u32 %v273, 4294901760
        %1586 = vmatprep.subr.mxu0 %v1585
        %v1587 = vand.u32 %v272, 4294901760
        %1588 = vmatpush1.msra.mxu0 %v1587
        %v1589 = vand.u32 %v275, 4294901760
        %1590 = vmatprep.subr.mxu0 %v1589
        %v1591 = vand.u32 %v274, 4294901760
        %1592 = vmatpush1.msra.mxu0 %v1591
        %v1593 = vand.u32 %v277, 4294901760
        %1594 = vmatprep.subr.mxu0 %v1593
        %v1595 = vand.u32 %v276, 4294901760
        %1596 = vmatpush1.msra.mxu0 %v1595
        %v1597 = vand.u32 %v279, 4294901760
        %1598 = vmatprep.subr.mxu0 %v1597
        %v1599 = vand.u32 %v278, 4294901760
        %1600 = vmatpush1.msra.mxu0 %v1599
        %v1601 = vand.u32 %v281, 4294901760
        %1602 = vmatprep.subr.mxu0 %v1601
        %v1603 = vand.u32 %v280, 4294901760
        %1604 = vmatpush1.msra.mxu0 %v1603
        %v1605 = vand.u32 %v283, 4294901760
        %1606 = vmatprep.subr.mxu0 %v1605
        %v1607 = vand.u32 %v282, 4294901760
        %1608 = vmatpush1.msra.mxu0 %v1607
        %v1609 = vand.u32 %v285, 4294901760
        %1610 = vmatprep.subr.mxu0 %v1609
        %v1611 = vand.u32 %v284, 4294901760
        %1612 = vmatpush1.msra.mxu0 %v1611
        %v1613 = vand.u32 %v287, 4294901760
        %1614 = vmatprep.subr.mxu0 %v1613
        %v1615 = vand.u32 %v286, 4294901760
        %1616 = vmatpush1.msra.mxu0 %v1615
        %v1617 = vand.u32 %v289, 4294901760
        %1618 = vmatprep.subr.mxu0 %v1617
        %v1619 = vand.u32 %v288, 4294901760
        %1620 = vmatpush1.msra.mxu0 %v1619
        %v1621 = vand.u32 %v291, 4294901760
        %1622 = vmatprep.subr.mxu0 %v1621
        %v1623 = vand.u32 %v290, 4294901760
        %1624 = vmatpush1.msra.mxu0 %v1623
        %v1625 = vand.u32 %v293, 4294901760
        %1626 = vmatprep.subr.mxu0 %v1625
        %v1627 = vand.u32 %v292, 4294901760
        %1628 = vmatpush1.msra.mxu0 %v1627
        %v1629 = vand.u32 %v295, 4294901760
        %1630 = vmatprep.subr.mxu0 %v1629
        %v1631 = vand.u32 %v294, 4294901760
        %1632 = vmatpush1.msra.mxu0 %v1631
        %v1633 = vand.u32 %v297, 4294901760
        %1634 = vmatprep.subr.mxu0 %v1633
        %v1635 = vand.u32 %v296, 4294901760
        %1636 = vmatpush1.msra.mxu0 %v1635
        %v1637 = vand.u32 %v299, 4294901760
        %1638 = vmatprep.subr.mxu0 %v1637
        %v1639 = vand.u32 %v298, 4294901760
        %1640 = vmatpush1.msra.mxu0 %v1639
        %v1641 = vand.u32 %v227, 4294901760
        %1642 = vmatprep.mubr.f32.mxu0 %v1641
        %v1643 = vand.u32 %v223, 4294901760
        %1644 = vmatmul.mubr.f32.gmra.mrb[0].mxu0 %v1643
        %v1645 = vpop.f32.mrb[0].mxu0
        %v1646 = vadd.f32 %v1509, %v1645
        %v1647 = vpop.f32.mrb[0].mxu0
        %v1648 = vadd.f32 %v1511, %v1647
        %1649 = vdwg.mxu0
        %v1650 = vand.u32 %v301, 4294901760
        %1651 = vmatprep.subr.mxu0 %v1650
        %v1652 = vand.u32 %v300, 4294901760
        %1653 = vmatpush1.msra.mxu0 %v1652
        %v1654 = vand.u32 %v303, 4294901760
        %1655 = vmatprep.subr.mxu0 %v1654
        %v1656 = vand.u32 %v302, 4294901760
        %1657 = vmatpush1.msra.mxu0 %v1656
        %v1658 = vand.u32 %v305, 4294901760
        %1659 = vmatprep.subr.mxu0 %v1658
        %v1660 = vand.u32 %v304, 4294901760
        %1661 = vmatpush1.msra.mxu0 %v1660
        %v1662 = vand.u32 %v307, 4294901760
        %1663 = vmatprep.subr.mxu0 %v1662
        %v1664 = vand.u32 %v306, 4294901760
        %1665 = vmatpush1.msra.mxu0 %v1664
        %v1666 = vand.u32 %v309, 4294901760
        %1667 = vmatprep.subr.mxu0 %v1666
        %v1668 = vand.u32 %v308, 4294901760
        %1669 = vmatpush1.msra.mxu0 %v1668
        %v1670 = vand.u32 %v311, 4294901760
        %1671 = vmatprep.subr.mxu0 %v1670
        %v1672 = vand.u32 %v310, 4294901760
        %1673 = vmatpush1.msra.mxu0 %v1672
        %v1674 = vand.u32 %v313, 4294901760
        %1675 = vmatprep.subr.mxu0 %v1674
        %v1676 = vand.u32 %v312, 4294901760
        %1677 = vmatpush1.msra.mxu0 %v1676
        %v1678 = vand.u32 %v315, 4294901760
        %1679 = vmatprep.subr.mxu0 %v1678
        %v1680 = vand.u32 %v314, 4294901760
        %1681 = vmatpush1.msra.mxu0 %v1680
        %v1682 = vand.u32 %v317, 4294901760
        %1683 = vmatprep.subr.mxu0 %v1682
        %v1684 = vand.u32 %v316, 4294901760
        %1685 = vmatpush1.msra.mxu0 %v1684
        %v1686 = vand.u32 %v319, 4294901760
        %1687 = vmatprep.subr.mxu0 %v1686
        %v1688 = vand.u32 %v318, 4294901760
        %1689 = vmatpush1.msra.mxu0 %v1688
        %v1690 = vand.u32 %v321, 4294901760
        %1691 = vmatprep.subr.mxu0 %v1690
        %v1692 = vand.u32 %v320, 4294901760
        %1693 = vmatpush1.msra.mxu0 %v1692
        %v1694 = vand.u32 %v323, 4294901760
        %1695 = vmatprep.subr.mxu0 %v1694
        %v1696 = vand.u32 %v322, 4294901760
        %1697 = vmatpush1.msra.mxu0 %v1696
        %v1698 = vand.u32 %v325, 4294901760
        %1699 = vmatprep.subr.mxu0 %v1698
        %v1700 = vand.u32 %v324, 4294901760
        %1701 = vmatpush1.msra.mxu0 %v1700
        %v1702 = vand.u32 %v327, 4294901760
        %1703 = vmatprep.subr.mxu0 %v1702
        %v1704 = vand.u32 %v326, 4294901760
        %1705 = vmatpush1.msra.mxu0 %v1704
        %v1706 = vand.u32 %v329, 4294901760
        %1707 = vmatprep.subr.mxu0 %v1706
        %v1708 = vand.u32 %v328, 4294901760
        %1709 = vmatpush1.msra.mxu0 %v1708
        %v1710 = vand.u32 %v331, 4294901760
        %1711 = vmatprep.subr.mxu0 %v1710
        %v1712 = vand.u32 %v330, 4294901760
        %1713 = vmatpush1.msra.mxu0 %v1712
        %v1714 = vand.u32 %v333, 4294901760
        %1715 = vmatprep.subr.mxu0 %v1714
        %v1716 = vand.u32 %v332, 4294901760
        %1717 = vmatpush1.msra.mxu0 %v1716
        %v1718 = vand.u32 %v335, 4294901760
        %1719 = vmatprep.subr.mxu0 %v1718
        %v1720 = vand.u32 %v334, 4294901760
        %1721 = vmatpush1.msra.mxu0 %v1720
        %v1722 = vand.u32 %v337, 4294901760
        %1723 = vmatprep.subr.mxu0 %v1722
        %v1724 = vand.u32 %v336, 4294901760
        %1725 = vmatpush1.msra.mxu0 %v1724
        %v1726 = vand.u32 %v339, 4294901760
        %1727 = vmatprep.subr.mxu0 %v1726
        %v1728 = vand.u32 %v338, 4294901760
        %1729 = vmatpush1.msra.mxu0 %v1728
        %v1730 = vand.u32 %v341, 4294901760
        %1731 = vmatprep.subr.mxu0 %v1730
        %v1732 = vand.u32 %v340, 4294901760
        %1733 = vmatpush1.msra.mxu0 %v1732
        %v1734 = vand.u32 %v343, 4294901760
        %1735 = vmatprep.subr.mxu0 %v1734
        %v1736 = vand.u32 %v342, 4294901760
        %1737 = vmatpush1.msra.mxu0 %v1736
        %v1738 = vand.u32 %v345, 4294901760
        %1739 = vmatprep.subr.mxu0 %v1738
        %v1740 = vand.u32 %v344, 4294901760
        %1741 = vmatpush1.msra.mxu0 %v1740
        %v1742 = vand.u32 %v347, 4294901760
        %1743 = vmatprep.subr.mxu0 %v1742
        %v1744 = vand.u32 %v346, 4294901760
        %1745 = vmatpush1.msra.mxu0 %v1744
        %v1746 = vand.u32 %v349, 4294901760
        %1747 = vmatprep.subr.mxu0 %v1746
        %v1748 = vand.u32 %v348, 4294901760
        %1749 = vmatpush1.msra.mxu0 %v1748
        %v1750 = vand.u32 %v351, 4294901760
        %1751 = vmatprep.subr.mxu0 %v1750
        %v1752 = vand.u32 %v350, 4294901760
        %1753 = vmatpush1.msra.mxu0 %v1752
        %v1754 = vand.u32 %v353, 4294901760
        %1755 = vmatprep.subr.mxu0 %v1754
        %v1756 = vand.u32 %v352, 4294901760
        %1757 = vmatpush1.msra.mxu0 %v1756
        %v1758 = vand.u32 %v355, 4294901760
        %1759 = vmatprep.subr.mxu0 %v1758
        %v1760 = vand.u32 %v354, 4294901760
        %1761 = vmatpush1.msra.mxu0 %v1760
        %v1762 = vand.u32 %v357, 4294901760
        %1763 = vmatprep.subr.mxu0 %v1762
        %v1764 = vand.u32 %v356, 4294901760
        %1765 = vmatpush1.msra.mxu0 %v1764
        %v1766 = vand.u32 %v359, 4294901760
        %1767 = vmatprep.subr.mxu0 %v1766
        %v1768 = vand.u32 %v358, 4294901760
        %1769 = vmatpush1.msra.mxu0 %v1768
        %v1770 = vand.u32 %v361, 4294901760
        %1771 = vmatprep.subr.mxu0 %v1770
        %v1772 = vand.u32 %v360, 4294901760
        %1773 = vmatpush1.msra.mxu0 %v1772
        %v1774 = vand.u32 %v363, 4294901760
        %1775 = vmatprep.subr.mxu0 %v1774
        %v1776 = vand.u32 %v362, 4294901760
        %1777 = vmatpush1.msra.mxu0 %v1776
        %v1778 = vand.u32 %v235, 4294901760
        %v1779 = vsub.f32 %v235, %v1778
        %v1780 = vand.u32 %v1779, 4294901760
        %v1781 = vsub.f32 %v1779, %v1780
        %v1782 = vand.u32 %v1781, 4294901760
        %1783 = vmatprep.mubr.f32.mxu0 %v1782
        %v1784 = vand.u32 %v231, 4294901760
        %v1785 = vsub.f32 %v231, %v1784
        %v1786 = vand.u32 %v1785, 4294901760
        %v1787 = vsub.f32 %v1785, %v1786
        %v1788 = vand.u32 %v1787, 4294901760
        %1789 = vmatmul.mubr.f32.gmra.mrb[0].mxu0 %v1788
        %v1790 = vpop.f32.mrb[0].mxu0
        %v1791 = vadd.f32 %v1646, %v1790
        %v1792 = vpop.f32.mrb[0].mxu0
        %v1793 = vadd.f32 %v1648, %v1792
        %1794 = vdwg.mxu0
        %v1795 = vand.u32 %v301, 4294901760
        %v1796 = vsub.f32 %v301, %v1795
        %v1797 = vand.u32 %v1796, 4294901760
        %v1798 = vsub.f32 %v1796, %v1797
        %v1799 = vand.u32 %v1798, 4294901760
        %1800 = vmatprep.subr.mxu0 %v1799
        %v1801 = vand.u32 %v300, 4294901760
        %v1802 = vsub.f32 %v300, %v1801
        %v1803 = vand.u32 %v1802, 4294901760
        %v1804 = vsub.f32 %v1802, %v1803
        %v1805 = vand.u32 %v1804, 4294901760
        %1806 = vmatpush1.msra.mxu0 %v1805
        %v1807 = vand.u32 %v303, 4294901760
        %v1808 = vsub.f32 %v303, %v1807
        %v1809 = vand.u32 %v1808, 4294901760
        %v1810 = vsub.f32 %v1808, %v1809
        %v1811 = vand.u32 %v1810, 4294901760
        %1812 = vmatprep.subr.mxu0 %v1811
        %v1813 = vand.u32 %v302, 4294901760
        %v1814 = vsub.f32 %v302, %v1813
        %v1815 = vand.u32 %v1814, 4294901760
        %v1816 = vsub.f32 %v1814, %v1815
        %v1817 = vand.u32 %v1816, 4294901760
        %1818 = vmatpush1.msra.mxu0 %v1817
        %v1819 = vand.u32 %v305, 4294901760
        %v1820 = vsub.f32 %v305, %v1819
        %v1821 = vand.u32 %v1820, 4294901760
        %v1822 = vsub.f32 %v1820, %v1821
        %v1823 = vand.u32 %v1822, 4294901760
        %1824 = vmatprep.subr.mxu0 %v1823
        %v1825 = vand.u32 %v304, 4294901760
        %v1826 = vsub.f32 %v304, %v1825
        %v1827 = vand.u32 %v1826, 4294901760
        %v1828 = vsub.f32 %v1826, %v1827
        %v1829 = vand.u32 %v1828, 4294901760
        %1830 = vmatpush1.msra.mxu0 %v1829
        %v1831 = vand.u32 %v307, 4294901760
        %v1832 = vsub.f32 %v307, %v1831
        %v1833 = vand.u32 %v1832, 4294901760
        %v1834 = vsub.f32 %v1832, %v1833
        %v1835 = vand.u32 %v1834, 4294901760
        %1836 = vmatprep.subr.mxu0 %v1835
        %v1837 = vand.u32 %v306, 4294901760
        %v1838 = vsub.f32 %v306, %v1837
        %v1839 = vand.u32 %v1838, 4294901760
        %v1840 = vsub.f32 %v1838, %v1839
        %v1841 = vand.u32 %v1840, 4294901760
        %1842 = vmatpush1.msra.mxu0 %v1841
        %v1843 = vand.u32 %v309, 4294901760
        %v1844 = vsub.f32 %v309, %v1843
        %v1845 = vand.u32 %v1844, 4294901760
        %v1846 = vsub.f32 %v1844, %v1845
        %v1847 = vand.u32 %v1846, 4294901760
        %1848 = vmatprep.subr.mxu0 %v1847
        %v1849 = vand.u32 %v308, 4294901760
        %v1850 = vsub.f32 %v308, %v1849
        %v1851 = vand.u32 %v1850, 4294901760
        %v1852 = vsub.f32 %v1850, %v1851
        %v1853 = vand.u32 %v1852, 4294901760
        %1854 = vmatpush1.msra.mxu0 %v1853
        %v1855 = vand.u32 %v311, 4294901760
        %v1856 = vsub.f32 %v311, %v1855
        %v1857 = vand.u32 %v1856, 4294901760
        %v1858 = vsub.f32 %v1856, %v1857
        %v1859 = vand.u32 %v1858, 4294901760
        %1860 = vmatprep.subr.mxu0 %v1859
        %v1861 = vand.u32 %v310, 4294901760
        %v1862 = vsub.f32 %v310, %v1861
        %v1863 = vand.u32 %v1862, 4294901760
        %v1864 = vsub.f32 %v1862, %v1863
        %v1865 = vand.u32 %v1864, 4294901760
        %1866 = vmatpush1.msra.mxu0 %v1865
        %v1867 = vand.u32 %v313, 4294901760
        %v1868 = vsub.f32 %v313, %v1867
        %v1869 = vand.u32 %v1868, 4294901760
        %v1870 = vsub.f32 %v1868, %v1869
        %v1871 = vand.u32 %v1870, 4294901760
        %1872 = vmatprep.subr.mxu0 %v1871
        %v1873 = vand.u32 %v312, 4294901760
        %v1874 = vsub.f32 %v312, %v1873
        %v1875 = vand.u32 %v1874, 4294901760
        %v1876 = vsub.f32 %v1874, %v1875
        %v1877 = vand.u32 %v1876, 4294901760
        %1878 = vmatpush1.msra.mxu0 %v1877
        %v1879 = vand.u32 %v315, 4294901760
        %v1880 = vsub.f32 %v315, %v1879
        %v1881 = vand.u32 %v1880, 4294901760
        %v1882 = vsub.f32 %v1880, %v1881
        %v1883 = vand.u32 %v1882, 4294901760
        %1884 = vmatprep.subr.mxu0 %v1883
        %v1885 = vand.u32 %v314, 4294901760
        %v1886 = vsub.f32 %v314, %v1885
        %v1887 = vand.u32 %v1886, 4294901760
        %v1888 = vsub.f32 %v1886, %v1887
        %v1889 = vand.u32 %v1888, 4294901760
        %1890 = vmatpush1.msra.mxu0 %v1889
        %v1891 = vand.u32 %v317, 4294901760
        %v1892 = vsub.f32 %v317, %v1891
        %v1893 = vand.u32 %v1892, 4294901760
        %v1894 = vsub.f32 %v1892, %v1893
        %v1895 = vand.u32 %v1894, 4294901760
        %1896 = vmatprep.subr.mxu0 %v1895
        %v1897 = vand.u32 %v316, 4294901760
        %v1898 = vsub.f32 %v316, %v1897
        %v1899 = vand.u32 %v1898, 4294901760
        %v1900 = vsub.f32 %v1898, %v1899
        %v1901 = vand.u32 %v1900, 4294901760
        %1902 = vmatpush1.msra.mxu0 %v1901
        %v1903 = vand.u32 %v319, 4294901760
        %v1904 = vsub.f32 %v319, %v1903
        %v1905 = vand.u32 %v1904, 4294901760
        %v1906 = vsub.f32 %v1904, %v1905
        %v1907 = vand.u32 %v1906, 4294901760
        %1908 = vmatprep.subr.mxu0 %v1907
        %v1909 = vand.u32 %v318, 4294901760
        %v1910 = vsub.f32 %v318, %v1909
        %v1911 = vand.u32 %v1910, 4294901760
        %v1912 = vsub.f32 %v1910, %v1911
        %v1913 = vand.u32 %v1912, 4294901760
        %1914 = vmatpush1.msra.mxu0 %v1913
        %v1915 = vand.u32 %v321, 4294901760
        %v1916 = vsub.f32 %v321, %v1915
        %v1917 = vand.u32 %v1916, 4294901760
        %v1918 = vsub.f32 %v1916, %v1917
        %v1919 = vand.u32 %v1918, 4294901760
        %1920 = vmatprep.subr.mxu0 %v1919
        %v1921 = vand.u32 %v320, 4294901760
        %v1922 = vsub.f32 %v320, %v1921
        %v1923 = vand.u32 %v1922, 4294901760
        %v1924 = vsub.f32 %v1922, %v1923
        %v1925 = vand.u32 %v1924, 4294901760
        %1926 = vmatpush1.msra.mxu0 %v1925
        %v1927 = vand.u32 %v323, 4294901760
        %v1928 = vsub.f32 %v323, %v1927
        %v1929 = vand.u32 %v1928, 4294901760
        %v1930 = vsub.f32 %v1928, %v1929
        %v1931 = vand.u32 %v1930, 4294901760
        %1932 = vmatprep.subr.mxu0 %v1931
        %v1933 = vand.u32 %v322, 4294901760
        %v1934 = vsub.f32 %v322, %v1933
        %v1935 = vand.u32 %v1934, 4294901760
        %v1936 = vsub.f32 %v1934, %v1935
        %v1937 = vand.u32 %v1936, 4294901760
        %1938 = vmatpush1.msra.mxu0 %v1937
        %v1939 = vand.u32 %v325, 4294901760
        %v1940 = vsub.f32 %v325, %v1939
        %v1941 = vand.u32 %v1940, 4294901760
        %v1942 = vsub.f32 %v1940, %v1941
        %v1943 = vand.u32 %v1942, 4294901760
        %1944 = vmatprep.subr.mxu0 %v1943
        %v1945 = vand.u32 %v324, 4294901760
        %v1946 = vsub.f32 %v324, %v1945
        %v1947 = vand.u32 %v1946, 4294901760
        %v1948 = vsub.f32 %v1946, %v1947
        %v1949 = vand.u32 %v1948, 4294901760
        %1950 = vmatpush1.msra.mxu0 %v1949
        %v1951 = vand.u32 %v327, 4294901760
        %v1952 = vsub.f32 %v327, %v1951
        %v1953 = vand.u32 %v1952, 4294901760
        %v1954 = vsub.f32 %v1952, %v1953
        %v1955 = vand.u32 %v1954, 4294901760
        %1956 = vmatprep.subr.mxu0 %v1955
        %v1957 = vand.u32 %v326, 4294901760
        %v1958 = vsub.f32 %v326, %v1957
        %v1959 = vand.u32 %v1958, 4294901760
        %v1960 = vsub.f32 %v1958, %v1959
        %v1961 = vand.u32 %v1960, 4294901760
        %1962 = vmatpush1.msra.mxu0 %v1961
        %v1963 = vand.u32 %v329, 4294901760
        %v1964 = vsub.f32 %v329, %v1963
        %v1965 = vand.u32 %v1964, 4294901760
        %v1966 = vsub.f32 %v1964, %v1965
        %v1967 = vand.u32 %v1966, 4294901760
        %1968 = vmatprep.subr.mxu0 %v1967
        %v1969 = vand.u32 %v328, 4294901760
        %v1970 = vsub.f32 %v328, %v1969
        %v1971 = vand.u32 %v1970, 4294901760
        %v1972 = vsub.f32 %v1970, %v1971
        %v1973 = vand.u32 %v1972, 4294901760
        %1974 = vmatpush1.msra.mxu0 %v1973
        %v1975 = vand.u32 %v331, 4294901760
        %v1976 = vsub.f32 %v331, %v1975
        %v1977 = vand.u32 %v1976, 4294901760
        %v1978 = vsub.f32 %v1976, %v1977
        %v1979 = vand.u32 %v1978, 4294901760
        %1980 = vmatprep.subr.mxu0 %v1979
        %v1981 = vand.u32 %v330, 4294901760
        %v1982 = vsub.f32 %v330, %v1981
        %v1983 = vand.u32 %v1982, 4294901760
        %v1984 = vsub.f32 %v1982, %v1983
        %v1985 = vand.u32 %v1984, 4294901760
        %1986 = vmatpush1.msra.mxu0 %v1985
        %v1987 = vand.u32 %v333, 4294901760
        %v1988 = vsub.f32 %v333, %v1987
        %v1989 = vand.u32 %v1988, 4294901760
        %v1990 = vsub.f32 %v1988, %v1989
        %v1991 = vand.u32 %v1990, 4294901760
        %1992 = vmatprep.subr.mxu0 %v1991
        %v1993 = vand.u32 %v332, 4294901760
        %v1994 = vsub.f32 %v332, %v1993
        %v1995 = vand.u32 %v1994, 4294901760
        %v1996 = vsub.f32 %v1994, %v1995
        %v1997 = vand.u32 %v1996, 4294901760
        %1998 = vmatpush1.msra.mxu0 %v1997
        %v1999 = vand.u32 %v335, 4294901760
        %v2000 = vsub.f32 %v335, %v1999
        %v2001 = vand.u32 %v2000, 4294901760
        %v2002 = vsub.f32 %v2000, %v2001
        %v2003 = vand.u32 %v2002, 4294901760
        %2004 = vmatprep.subr.mxu0 %v2003
        %v2005 = vand.u32 %v334, 4294901760
        %v2006 = vsub.f32 %v334, %v2005
        %v2007 = vand.u32 %v2006, 4294901760
        %v2008 = vsub.f32 %v2006, %v2007
        %v2009 = vand.u32 %v2008, 4294901760
        %2010 = vmatpush1.msra.mxu0 %v2009
        %v2011 = vand.u32 %v337, 4294901760
        %v2012 = vsub.f32 %v337, %v2011
        %v2013 = vand.u32 %v2012, 4294901760
        %v2014 = vsub.f32 %v2012, %v2013
        %v2015 = vand.u32 %v2014, 4294901760
        %2016 = vmatprep.subr.mxu0 %v2015
        %v2017 = vand.u32 %v336, 4294901760
        %v2018 = vsub.f32 %v336, %v2017
        %v2019 = vand.u32 %v2018, 4294901760
        %v2020 = vsub.f32 %v2018, %v2019
        %v2021 = vand.u32 %v2020, 4294901760
        %2022 = vmatpush1.msra.mxu0 %v2021
        %v2023 = vand.u32 %v339, 4294901760
        %v2024 = vsub.f32 %v339, %v2023
        %v2025 = vand.u32 %v2024, 4294901760
        %v2026 = vsub.f32 %v2024, %v2025
        %v2027 = vand.u32 %v2026, 4294901760
        %2028 = vmatprep.subr.mxu0 %v2027
        %v2029 = vand.u32 %v338, 4294901760
        %v2030 = vsub.f32 %v338, %v2029
        %v2031 = vand.u32 %v2030, 4294901760
        %v2032 = vsub.f32 %v2030, %v2031
        %v2033 = vand.u32 %v2032, 4294901760
        %2034 = vmatpush1.msra.mxu0 %v2033
        %v2035 = vand.u32 %v341, 4294901760
        %v2036 = vsub.f32 %v341, %v2035
        %v2037 = vand.u32 %v2036, 4294901760
        %v2038 = vsub.f32 %v2036, %v2037
        %v2039 = vand.u32 %v2038, 4294901760
        %2040 = vmatprep.subr.mxu0 %v2039
        %v2041 = vand.u32 %v340, 4294901760
        %v2042 = vsub.f32 %v340, %v2041
        %v2043 = vand.u32 %v2042, 4294901760
        %v2044 = vsub.f32 %v2042, %v2043
        %v2045 = vand.u32 %v2044, 4294901760
        %2046 = vmatpush1.msra.mxu0 %v2045
        %v2047 = vand.u32 %v343, 4294901760
        %v2048 = vsub.f32 %v343, %v2047
        %v2049 = vand.u32 %v2048, 4294901760
        %v2050 = vsub.f32 %v2048, %v2049
        %v2051 = vand.u32 %v2050, 4294901760
        %2052 = vmatprep.subr.mxu0 %v2051
        %v2053 = vand.u32 %v342, 4294901760
        %v2054 = vsub.f32 %v342, %v2053
        %v2055 = vand.u32 %v2054, 4294901760
        %v2056 = vsub.f32 %v2054, %v2055
        %v2057 = vand.u32 %v2056, 4294901760
        %2058 = vmatpush1.msra.mxu0 %v2057
        %v2059 = vand.u32 %v345, 4294901760
        %v2060 = vsub.f32 %v345, %v2059
        %v2061 = vand.u32 %v2060, 4294901760
        %v2062 = vsub.f32 %v2060, %v2061
        %v2063 = vand.u32 %v2062, 4294901760
        %2064 = vmatprep.subr.mxu0 %v2063
        %v2065 = vand.u32 %v344, 4294901760
        %v2066 = vsub.f32 %v344, %v2065
        %v2067 = vand.u32 %v2066, 4294901760
        %v2068 = vsub.f32 %v2066, %v2067
        %v2069 = vand.u32 %v2068, 4294901760
        %2070 = vmatpush1.msra.mxu0 %v2069
        %v2071 = vand.u32 %v347, 4294901760
        %v2072 = vsub.f32 %v347, %v2071
        %v2073 = vand.u32 %v2072, 4294901760
        %v2074 = vsub.f32 %v2072, %v2073
        %v2075 = vand.u32 %v2074, 4294901760
        %2076 = vmatprep.subr.mxu0 %v2075
        %v2077 = vand.u32 %v346, 4294901760
        %v2078 = vsub.f32 %v346, %v2077
        %v2079 = vand.u32 %v2078, 4294901760
        %v2080 = vsub.f32 %v2078, %v2079
        %v2081 = vand.u32 %v2080, 4294901760
        %2082 = vmatpush1.msra.mxu0 %v2081
        %v2083 = vand.u32 %v349, 4294901760
        %v2084 = vsub.f32 %v349, %v2083
        %v2085 = vand.u32 %v2084, 4294901760
        %v2086 = vsub.f32 %v2084, %v2085
        %v2087 = vand.u32 %v2086, 4294901760
        %2088 = vmatprep.subr.mxu0 %v2087
        %v2089 = vand.u32 %v348, 4294901760
        %v2090 = vsub.f32 %v348, %v2089
        %v2091 = vand.u32 %v2090, 4294901760
        %v2092 = vsub.f32 %v2090, %v2091
        %v2093 = vand.u32 %v2092, 4294901760
        %2094 = vmatpush1.msra.mxu0 %v2093
        %v2095 = vand.u32 %v351, 4294901760
        %v2096 = vsub.f32 %v351, %v2095
        %v2097 = vand.u32 %v2096, 4294901760
        %v2098 = vsub.f32 %v2096, %v2097
        %v2099 = vand.u32 %v2098, 4294901760
        %2100 = vmatprep.subr.mxu0 %v2099
        %v2101 = vand.u32 %v350, 4294901760
        %v2102 = vsub.f32 %v350, %v2101
        %v2103 = vand.u32 %v2102, 4294901760
        %v2104 = vsub.f32 %v2102, %v2103
        %v2105 = vand.u32 %v2104, 4294901760
        %2106 = vmatpush1.msra.mxu0 %v2105
        %v2107 = vand.u32 %v353, 4294901760
        %v2108 = vsub.f32 %v353, %v2107
        %v2109 = vand.u32 %v2108, 4294901760
        %v2110 = vsub.f32 %v2108, %v2109
        %v2111 = vand.u32 %v2110, 4294901760
        %2112 = vmatprep.subr.mxu0 %v2111
        %v2113 = vand.u32 %v352, 4294901760
        %v2114 = vsub.f32 %v352, %v2113
        %v2115 = vand.u32 %v2114, 4294901760
        %v2116 = vsub.f32 %v2114, %v2115
        %v2117 = vand.u32 %v2116, 4294901760
        %2118 = vmatpush1.msra.mxu0 %v2117
        %v2119 = vand.u32 %v355, 4294901760
        %v2120 = vsub.f32 %v355, %v2119
        %v2121 = vand.u32 %v2120, 4294901760
        %v2122 = vsub.f32 %v2120, %v2121
        %v2123 = vand.u32 %v2122, 4294901760
        %2124 = vmatprep.subr.mxu0 %v2123
        %v2125 = vand.u32 %v354, 4294901760
        %v2126 = vsub.f32 %v354, %v2125
        %v2127 = vand.u32 %v2126, 4294901760
        %v2128 = vsub.f32 %v2126, %v2127
        %v2129 = vand.u32 %v2128, 4294901760
        %2130 = vmatpush1.msra.mxu0 %v2129
        %v2131 = vand.u32 %v357, 4294901760
        %v2132 = vsub.f32 %v357, %v2131
        %v2133 = vand.u32 %v2132, 4294901760
        %v2134 = vsub.f32 %v2132, %v2133
        %v2135 = vand.u32 %v2134, 4294901760
        %2136 = vmatprep.subr.mxu0 %v2135
        %v2137 = vand.u32 %v356, 4294901760
        %v2138 = vsub.f32 %v356, %v2137
        %v2139 = vand.u32 %v2138, 4294901760
        %v2140 = vsub.f32 %v2138, %v2139
        %v2141 = vand.u32 %v2140, 4294901760
        %2142 = vmatpush1.msra.mxu0 %v2141
        %v2143 = vand.u32 %v359, 4294901760
        %v2144 = vsub.f32 %v359, %v2143
        %v2145 = vand.u32 %v2144, 4294901760
        %v2146 = vsub.f32 %v2144, %v2145
        %v2147 = vand.u32 %v2146, 4294901760
        %2148 = vmatprep.subr.mxu0 %v2147
        %v2149 = vand.u32 %v358, 4294901760
        %v2150 = vsub.f32 %v358, %v2149
        %v2151 = vand.u32 %v2150, 4294901760
        %v2152 = vsub.f32 %v2150, %v2151
        %v2153 = vand.u32 %v2152, 4294901760
        %2154 = vmatpush1.msra.mxu0 %v2153
        %v2155 = vand.u32 %v361, 4294901760
        %v2156 = vsub.f32 %v361, %v2155
        %v2157 = vand.u32 %v2156, 4294901760
        %v2158 = vsub.f32 %v2156, %v2157
        %v2159 = vand.u32 %v2158, 4294901760
        %2160 = vmatprep.subr.mxu0 %v2159
        %v2161 = vand.u32 %v360, 4294901760
        %v2162 = vsub.f32 %v360, %v2161
        %v2163 = vand.u32 %v2162, 4294901760
        %v2164 = vsub.f32 %v2162, %v2163
        %v2165 = vand.u32 %v2164, 4294901760
        %2166 = vmatpush1.msra.mxu0 %v2165
        %v2167 = vand.u32 %v363, 4294901760
        %v2168 = vsub.f32 %v363, %v2167
        %v2169 = vand.u32 %v2168, 4294901760
        %v2170 = vsub.f32 %v2168, %v2169
        %v2171 = vand.u32 %v2170, 4294901760
        %2172 = vmatprep.subr.mxu0 %v2171
        %v2173 = vand.u32 %v362, 4294901760
        %v2174 = vsub.f32 %v362, %v2173
        %v2175 = vand.u32 %v2174, 4294901760
        %v2176 = vsub.f32 %v2174, %v2175
        %v2177 = vand.u32 %v2176, 4294901760
        %2178 = vmatpush1.msra.mxu0 %v2177
        %v2179 = vand.u32 %v235, 4294901760
        %2180 = vmatprep.mubr.f32.mxu0 %v2179
        %v2181 = vand.u32 %v231, 4294901760
        %2182 = vmatmul.mubr.f32.gmra.mrb[0].mxu0 %v2181
        %v2183 = vpop.f32.mrb[0].mxu0
        %v2184 = vadd.f32 %v1791, %v2183
        %v2185 = vpop.f32.mrb[0].mxu0
        %v2186 = vadd.f32 %v1793, %v2185
        %2187 = vdwg.mxu0
        %v2188 = vand.u32 %v301, 4294901760
        %v2189 = vsub.f32 %v301, %v2188
        %2190 = vmatprep.subr.mxu0 %v2189
        %v2191 = vand.u32 %v300, 4294901760
        %v2192 = vsub.f32 %v300, %v2191
        %2193 = vmatpush1.msra.mxu0 %v2192
        %v2194 = vand.u32 %v303, 4294901760
        %v2195 = vsub.f32 %v303, %v2194
        %2196 = vmatprep.subr.mxu0 %v2195
        %v2197 = vand.u32 %v302, 4294901760
        %v2198 = vsub.f32 %v302, %v2197
        %2199 = vmatpush1.msra.mxu0 %v2198
        %v2200 = vand.u32 %v305, 4294901760
        %v2201 = vsub.f32 %v305, %v2200
        %2202 = vmatprep.subr.mxu0 %v2201
        %v2203 = vand.u32 %v304, 4294901760
        %v2204 = vsub.f32 %v304, %v2203
        %2205 = vmatpush1.msra.mxu0 %v2204
        %v2206 = vand.u32 %v307, 4294901760
        %v2207 = vsub.f32 %v307, %v2206
        %2208 = vmatprep.subr.mxu0 %v2207
        %v2209 = vand.u32 %v306, 4294901760
        %v2210 = vsub.f32 %v306, %v2209
        %2211 = vmatpush1.msra.mxu0 %v2210
        %v2212 = vand.u32 %v309, 4294901760
        %v2213 = vsub.f32 %v309, %v2212
        %2214 = vmatprep.subr.mxu0 %v2213
        %v2215 = vand.u32 %v308, 4294901760
        %v2216 = vsub.f32 %v308, %v2215
        %2217 = vmatpush1.msra.mxu0 %v2216
        %v2218 = vand.u32 %v311, 4294901760
        %v2219 = vsub.f32 %v311, %v2218
        %2220 = vmatprep.subr.mxu0 %v2219
        %v2221 = vand.u32 %v310, 4294901760
        %v2222 = vsub.f32 %v310, %v2221
        %2223 = vmatpush1.msra.mxu0 %v2222
        %v2224 = vand.u32 %v313, 4294901760
        %v2225 = vsub.f32 %v313, %v2224
        %2226 = vmatprep.subr.mxu0 %v2225
        %v2227 = vand.u32 %v312, 4294901760
        %v2228 = vsub.f32 %v312, %v2227
        %2229 = vmatpush1.msra.mxu0 %v2228
        %v2230 = vand.u32 %v315, 4294901760
        %v2231 = vsub.f32 %v315, %v2230
        %2232 = vmatprep.subr.mxu0 %v2231
        %v2233 = vand.u32 %v314, 4294901760
        %v2234 = vsub.f32 %v314, %v2233
        %2235 = vmatpush1.msra.mxu0 %v2234
        %v2236 = vand.u32 %v317, 4294901760
        %v2237 = vsub.f32 %v317, %v2236
        %2238 = vmatprep.subr.mxu0 %v2237
        %v2239 = vand.u32 %v316, 4294901760
        %v2240 = vsub.f32 %v316, %v2239
        %2241 = vmatpush1.msra.mxu0 %v2240
        %v2242 = vand.u32 %v319, 4294901760
        %v2243 = vsub.f32 %v319, %v2242
        %2244 = vmatprep.subr.mxu0 %v2243
        %v2245 = vand.u32 %v318, 4294901760
        %v2246 = vsub.f32 %v318, %v2245
        %2247 = vmatpush1.msra.mxu0 %v2246
        %v2248 = vand.u32 %v321, 4294901760
        %v2249 = vsub.f32 %v321, %v2248
        %2250 = vmatprep.subr.mxu0 %v2249
        %v2251 = vand.u32 %v320, 4294901760
        %v2252 = vsub.f32 %v320, %v2251
        %2253 = vmatpush1.msra.mxu0 %v2252
        %v2254 = vand.u32 %v323, 4294901760
        %v2255 = vsub.f32 %v323, %v2254
        %2256 = vmatprep.subr.mxu0 %v2255
        %v2257 = vand.u32 %v322, 4294901760
        %v2258 = vsub.f32 %v322, %v2257
        %2259 = vmatpush1.msra.mxu0 %v2258
        %v2260 = vand.u32 %v325, 4294901760
        %v2261 = vsub.f32 %v325, %v2260
        %2262 = vmatprep.subr.mxu0 %v2261
        %v2263 = vand.u32 %v324, 4294901760
        %v2264 = vsub.f32 %v324, %v2263
        %2265 = vmatpush1.msra.mxu0 %v2264
        %v2266 = vand.u32 %v327, 4294901760
        %v2267 = vsub.f32 %v327, %v2266
        %2268 = vmatprep.subr.mxu0 %v2267
        %v2269 = vand.u32 %v326, 4294901760
        %v2270 = vsub.f32 %v326, %v2269
        %2271 = vmatpush1.msra.mxu0 %v2270
        %v2272 = vand.u32 %v329, 4294901760
        %v2273 = vsub.f32 %v329, %v2272
        %2274 = vmatprep.subr.mxu0 %v2273
        %v2275 = vand.u32 %v328, 4294901760
        %v2276 = vsub.f32 %v328, %v2275
        %2277 = vmatpush1.msra.mxu0 %v2276
        %v2278 = vand.u32 %v331, 4294901760
        %v2279 = vsub.f32 %v331, %v2278
        %2280 = vmatprep.subr.mxu0 %v2279
        %v2281 = vand.u32 %v330, 4294901760
        %v2282 = vsub.f32 %v330, %v2281
        %2283 = vmatpush1.msra.mxu0 %v2282
        %v2284 = vand.u32 %v333, 4294901760
        %v2285 = vsub.f32 %v333, %v2284
        %2286 = vmatprep.subr.mxu0 %v2285
        %v2287 = vand.u32 %v332, 4294901760
        %v2288 = vsub.f32 %v332, %v2287
        %2289 = vmatpush1.msra.mxu0 %v2288
        %v2290 = vand.u32 %v335, 4294901760
        %v2291 = vsub.f32 %v335, %v2290
        %2292 = vmatprep.subr.mxu0 %v2291
        %v2293 = vand.u32 %v334, 4294901760
        %v2294 = vsub.f32 %v334, %v2293
        %2295 = vmatpush1.msra.mxu0 %v2294
        %v2296 = vand.u32 %v337, 4294901760
        %v2297 = vsub.f32 %v337, %v2296
        %2298 = vmatprep.subr.mxu0 %v2297
        %v2299 = vand.u32 %v336, 4294901760
        %v2300 = vsub.f32 %v336, %v2299
        %2301 = vmatpush1.msra.mxu0 %v2300
        %v2302 = vand.u32 %v339, 4294901760
        %v2303 = vsub.f32 %v339, %v2302
        %2304 = vmatprep.subr.mxu0 %v2303
        %v2305 = vand.u32 %v338, 4294901760
        %v2306 = vsub.f32 %v338, %v2305
        %2307 = vmatpush1.msra.mxu0 %v2306
        %v2308 = vand.u32 %v341, 4294901760
        %v2309 = vsub.f32 %v341, %v2308
        %2310 = vmatprep.subr.mxu0 %v2309
        %v2311 = vand.u32 %v340, 4294901760
        %v2312 = vsub.f32 %v340, %v2311
        %2313 = vmatpush1.msra.mxu0 %v2312
        %v2314 = vand.u32 %v343, 4294901760
        %v2315 = vsub.f32 %v343, %v2314
        %2316 = vmatprep.subr.mxu0 %v2315
        %v2317 = vand.u32 %v342, 4294901760
        %v2318 = vsub.f32 %v342, %v2317
        %2319 = vmatpush1.msra.mxu0 %v2318
        %v2320 = vand.u32 %v345, 4294901760
        %v2321 = vsub.f32 %v345, %v2320
        %2322 = vmatprep.subr.mxu0 %v2321
        %v2323 = vand.u32 %v344, 4294901760
        %v2324 = vsub.f32 %v344, %v2323
        %2325 = vmatpush1.msra.mxu0 %v2324
        %v2326 = vand.u32 %v347, 4294901760
        %v2327 = vsub.f32 %v347, %v2326
        %2328 = vmatprep.subr.mxu0 %v2327
        %v2329 = vand.u32 %v346, 4294901760
        %v2330 = vsub.f32 %v346, %v2329
        %2331 = vmatpush1.msra.mxu0 %v2330
        %v2332 = vand.u32 %v349, 4294901760
        %v2333 = vsub.f32 %v349, %v2332
        %2334 = vmatprep.subr.mxu0 %v2333
        %v2335 = vand.u32 %v348, 4294901760
        %v2336 = vsub.f32 %v348, %v2335
        %2337 = vmatpush1.msra.mxu0 %v2336
        %v2338 = vand.u32 %v351, 4294901760
        %v2339 = vsub.f32 %v351, %v2338
        %2340 = vmatprep.subr.mxu0 %v2339
        %v2341 = vand.u32 %v350, 4294901760
        %v2342 = vsub.f32 %v350, %v2341
        %2343 = vmatpush1.msra.mxu0 %v2342
        %v2344 = vand.u32 %v353, 4294901760
        %v2345 = vsub.f32 %v353, %v2344
        %2346 = vmatprep.subr.mxu0 %v2345
        %v2347 = vand.u32 %v352, 4294901760
        %v2348 = vsub.f32 %v352, %v2347
        %2349 = vmatpush1.msra.mxu0 %v2348
        %v2350 = vand.u32 %v355, 4294901760
        %v2351 = vsub.f32 %v355, %v2350
        %2352 = vmatprep.subr.mxu0 %v2351
        %v2353 = vand.u32 %v354, 4294901760
        %v2354 = vsub.f32 %v354, %v2353
        %2355 = vmatpush1.msra.mxu0 %v2354
        %v2356 = vand.u32 %v357, 4294901760
        %v2357 = vsub.f32 %v357, %v2356
        %2358 = vmatprep.subr.mxu0 %v2357
        %v2359 = vand.u32 %v356, 4294901760
        %v2360 = vsub.f32 %v356, %v2359
        %2361 = vmatpush1.msra.mxu0 %v2360
        %v2362 = vand.u32 %v359, 4294901760
        %v2363 = vsub.f32 %v359, %v2362
        %2364 = vmatprep.subr.mxu0 %v2363
        %v2365 = vand.u32 %v358, 4294901760
        %v2366 = vsub.f32 %v358, %v2365
        %2367 = vmatpush1.msra.mxu0 %v2366
        %v2368 = vand.u32 %v361, 4294901760
        %v2369 = vsub.f32 %v361, %v2368
        %2370 = vmatprep.subr.mxu0 %v2369
        %v2371 = vand.u32 %v360, 4294901760
        %v2372 = vsub.f32 %v360, %v2371
        %2373 = vmatpush1.msra.mxu0 %v2372
        %v2374 = vand.u32 %v363, 4294901760
        %v2375 = vsub.f32 %v363, %v2374
        %2376 = vmatprep.subr.mxu0 %v2375
        %v2377 = vand.u32 %v362, 4294901760
        %v2378 = vsub.f32 %v362, %v2377
        %2379 = vmatpush1.msra.mxu0 %v2378
        %v2380 = vand.u32 %v235, 4294901760
        %v2381 = vsub.f32 %v235, %v2380
        %2382 = vmatprep.mubr.f32.mxu0 %v2381
        %v2383 = vand.u32 %v231, 4294901760
        %v2384 = vsub.f32 %v231, %v2383
        %2385 = vmatmul.mubr.f32.gmra.mrb[0].mxu0 %v2384
        %v2386 = vpop.f32.mrb[0].mxu0
        %v2387 = vadd.f32 %v2184, %v2386
        %v2388 = vpop.f32.mrb[0].mxu0
        %v2389 = vadd.f32 %v2186, %v2388
        %2390 = vdwg.mxu0
        %v2391 = vand.u32 %v301, 4294901760
        %2392 = vmatprep.subr.mxu0 %v2391
        %v2393 = vand.u32 %v300, 4294901760
        %2394 = vmatpush1.msra.mxu0 %v2393
        %v2395 = vand.u32 %v303, 4294901760
        %2396 = vmatprep.subr.mxu0 %v2395
        %v2397 = vand.u32 %v302, 4294901760
        %2398 = vmatpush1.msra.mxu0 %v2397
        %v2399 = vand.u32 %v305, 4294901760
        %2400 = vmatprep.subr.mxu0 %v2399
        %v2401 = vand.u32 %v304, 4294901760
        %2402 = vmatpush1.msra.mxu0 %v2401
        %v2403 = vand.u32 %v307, 4294901760
        %2404 = vmatprep.subr.mxu0 %v2403
        %v2405 = vand.u32 %v306, 4294901760
        %2406 = vmatpush1.msra.mxu0 %v2405
        %v2407 = vand.u32 %v309, 4294901760
        %2408 = vmatprep.subr.mxu0 %v2407
        %v2409 = vand.u32 %v308, 4294901760
        %2410 = vmatpush1.msra.mxu0 %v2409
        %v2411 = vand.u32 %v311, 4294901760
        %2412 = vmatprep.subr.mxu0 %v2411
        %v2413 = vand.u32 %v310, 4294901760
        %2414 = vmatpush1.msra.mxu0 %v2413
        %v2415 = vand.u32 %v313, 4294901760
        %2416 = vmatprep.subr.mxu0 %v2415
        %v2417 = vand.u32 %v312, 4294901760
        %2418 = vmatpush1.msra.mxu0 %v2417
        %v2419 = vand.u32 %v315, 4294901760
        %2420 = vmatprep.subr.mxu0 %v2419
        %v2421 = vand.u32 %v314, 4294901760
        %2422 = vmatpush1.msra.mxu0 %v2421
        %v2423 = vand.u32 %v317, 4294901760
        %2424 = vmatprep.subr.mxu0 %v2423
        %v2425 = vand.u32 %v316, 4294901760
        %2426 = vmatpush1.msra.mxu0 %v2425
        %v2427 = vand.u32 %v319, 4294901760
        %2428 = vmatprep.subr.mxu0 %v2427
        %v2429 = vand.u32 %v318, 4294901760
        %2430 = vmatpush1.msra.mxu0 %v2429
        %v2431 = vand.u32 %v321, 4294901760
        %2432 = vmatprep.subr.mxu0 %v2431
        %v2433 = vand.u32 %v320, 4294901760
        %2434 = vmatpush1.msra.mxu0 %v2433
        %v2435 = vand.u32 %v323, 4294901760
        %2436 = vmatprep.subr.mxu0 %v2435
        %v2437 = vand.u32 %v322, 4294901760
        %2438 = vmatpush1.msra.mxu0 %v2437
        %v2439 = vand.u32 %v325, 4294901760
        %2440 = vmatprep.subr.mxu0 %v2439
        %v2441 = vand.u32 %v324, 4294901760
        %2442 = vmatpush1.msra.mxu0 %v2441
        %v2443 = vand.u32 %v327, 4294901760
        %2444 = vmatprep.subr.mxu0 %v2443
        %v2445 = vand.u32 %v326, 4294901760
        %2446 = vmatpush1.msra.mxu0 %v2445
        %v2447 = vand.u32 %v329, 4294901760
        %2448 = vmatprep.subr.mxu0 %v2447
        %v2449 = vand.u32 %v328, 4294901760
        %2450 = vmatpush1.msra.mxu0 %v2449
        %v2451 = vand.u32 %v331, 4294901760
        %2452 = vmatprep.subr.mxu0 %v2451
        %v2453 = vand.u32 %v330, 4294901760
        %2454 = vmatpush1.msra.mxu0 %v2453
        %v2455 = vand.u32 %v333, 4294901760
        %2456 = vmatprep.subr.mxu0 %v2455
        %v2457 = vand.u32 %v332, 4294901760
        %2458 = vmatpush1.msra.mxu0 %v2457
        %v2459 = vand.u32 %v335, 4294901760
        %2460 = vmatprep.subr.mxu0 %v2459
        %v2461 = vand.u32 %v334, 4294901760
        %2462 = vmatpush1.msra.mxu0 %v2461
        %v2463 = vand.u32 %v337, 4294901760
        %2464 = vmatprep.subr.mxu0 %v2463
        %v2465 = vand.u32 %v336, 4294901760
        %2466 = vmatpush1.msra.mxu0 %v2465
        %v2467 = vand.u32 %v339, 4294901760
        %2468 = vmatprep.subr.mxu0 %v2467
        %v2469 = vand.u32 %v338, 4294901760
        %2470 = vmatpush1.msra.mxu0 %v2469
        %v2471 = vand.u32 %v341, 4294901760
        %2472 = vmatprep.subr.mxu0 %v2471
        %v2473 = vand.u32 %v340, 4294901760
        %2474 = vmatpush1.msra.mxu0 %v2473
        %v2475 = vand.u32 %v343, 4294901760
        %2476 = vmatprep.subr.mxu0 %v2475
        %v2477 = vand.u32 %v342, 4294901760
        %2478 = vmatpush1.msra.mxu0 %v2477
        %v2479 = vand.u32 %v345, 4294901760
        %2480 = vmatprep.subr.mxu0 %v2479
        %v2481 = vand.u32 %v344, 4294901760
        %2482 = vmatpush1.msra.mxu0 %v2481
        %v2483 = vand.u32 %v347, 4294901760
        %2484 = vmatprep.subr.mxu0 %v2483
        %v2485 = vand.u32 %v346, 4294901760
        %2486 = vmatpush1.msra.mxu0 %v2485
        %v2487 = vand.u32 %v349, 4294901760
        %2488 = vmatprep.subr.mxu0 %v2487
        %v2489 = vand.u32 %v348, 4294901760
        %2490 = vmatpush1.msra.mxu0 %v2489
        %v2491 = vand.u32 %v351, 4294901760
        %2492 = vmatprep.subr.mxu0 %v2491
        %v2493 = vand.u32 %v350, 4294901760
        %2494 = vmatpush1.msra.mxu0 %v2493
        %v2495 = vand.u32 %v353, 4294901760
        %2496 = vmatprep.subr.mxu0 %v2495
        %v2497 = vand.u32 %v352, 4294901760
        %2498 = vmatpush1.msra.mxu0 %v2497
        %v2499 = vand.u32 %v355, 4294901760
        %2500 = vmatprep.subr.mxu0 %v2499
        %v2501 = vand.u32 %v354, 4294901760
        %2502 = vmatpush1.msra.mxu0 %v2501
        %v2503 = vand.u32 %v357, 4294901760
        %2504 = vmatprep.subr.mxu0 %v2503
        %v2505 = vand.u32 %v356, 4294901760
        %2506 = vmatpush1.msra.mxu0 %v2505
        %v2507 = vand.u32 %v359, 4294901760
        %2508 = vmatprep.subr.mxu0 %v2507
        %v2509 = vand.u32 %v358, 4294901760
        %2510 = vmatpush1.msra.mxu0 %v2509
        %v2511 = vand.u32 %v361, 4294901760
        %2512 = vmatprep.subr.mxu0 %v2511
        %v2513 = vand.u32 %v360, 4294901760
        %2514 = vmatpush1.msra.mxu0 %v2513
        %v2515 = vand.u32 %v363, 4294901760
        %2516 = vmatprep.subr.mxu0 %v2515
        %v2517 = vand.u32 %v362, 4294901760
        %2518 = vmatpush1.msra.mxu0 %v2517
        %v2519 = vand.u32 %v235, 4294901760
        %v2520 = vsub.f32 %v235, %v2519
        %v2521 = vand.u32 %v2520, 4294901760
        %2522 = vmatprep.mubr.f32.mxu0 %v2521
        %v2523 = vand.u32 %v231, 4294901760
        %v2524 = vsub.f32 %v231, %v2523
        %v2525 = vand.u32 %v2524, 4294901760
        %2526 = vmatmul.mubr.f32.gmra.mrb[0].mxu0 %v2525
        %v2527 = vpop.f32.mrb[0].mxu0
        %v2528 = vadd.f32 %v2387, %v2527
        %v2529 = vpop.f32.mrb[0].mxu0
        %v2530 = vadd.f32 %v2389, %v2529
        %2531 = vdwg.mxu0
        %v2532 = vand.u32 %v301, 4294901760
        %v2533 = vsub.f32 %v301, %v2532
        %v2534 = vand.u32 %v2533, 4294901760
        %2535 = vmatprep.subr.mxu0 %v2534
        %v2536 = vand.u32 %v300, 4294901760
        %v2537 = vsub.f32 %v300, %v2536
        %v2538 = vand.u32 %v2537, 4294901760
        %2539 = vmatpush1.msra.mxu0 %v2538
        %v2540 = vand.u32 %v303, 4294901760
        %v2541 = vsub.f32 %v303, %v2540
        %v2542 = vand.u32 %v2541, 4294901760
        %2543 = vmatprep.subr.mxu0 %v2542
        %v2544 = vand.u32 %v302, 4294901760
        %v2545 = vsub.f32 %v302, %v2544
        %v2546 = vand.u32 %v2545, 4294901760
        %2547 = vmatpush1.msra.mxu0 %v2546
        %v2548 = vand.u32 %v305, 4294901760
        %v2549 = vsub.f32 %v305, %v2548
        %v2550 = vand.u32 %v2549, 4294901760
        %2551 = vmatprep.subr.mxu0 %v2550
        %v2552 = vand.u32 %v304, 4294901760
        %v2553 = vsub.f32 %v304, %v2552
        %v2554 = vand.u32 %v2553, 4294901760
        %2555 = vmatpush1.msra.mxu0 %v2554
        %v2556 = vand.u32 %v307, 4294901760
        %v2557 = vsub.f32 %v307, %v2556
        %v2558 = vand.u32 %v2557, 4294901760
        %2559 = vmatprep.subr.mxu0 %v2558
        %v2560 = vand.u32 %v306, 4294901760
        %v2561 = vsub.f32 %v306, %v2560
        %v2562 = vand.u32 %v2561, 4294901760
        %2563 = vmatpush1.msra.mxu0 %v2562
        %v2564 = vand.u32 %v309, 4294901760
        %v2565 = vsub.f32 %v309, %v2564
        %v2566 = vand.u32 %v2565, 4294901760
        %2567 = vmatprep.subr.mxu0 %v2566
        %v2568 = vand.u32 %v308, 4294901760
        %v2569 = vsub.f32 %v308, %v2568
        %v2570 = vand.u32 %v2569, 4294901760
        %2571 = vmatpush1.msra.mxu0 %v2570
        %v2572 = vand.u32 %v311, 4294901760
        %v2573 = vsub.f32 %v311, %v2572
        %v2574 = vand.u32 %v2573, 4294901760
        %2575 = vmatprep.subr.mxu0 %v2574
        %v2576 = vand.u32 %v310, 4294901760
        %v2577 = vsub.f32 %v310, %v2576
        %v2578 = vand.u32 %v2577, 4294901760
        %2579 = vmatpush1.msra.mxu0 %v2578
        %v2580 = vand.u32 %v313, 4294901760
        %v2581 = vsub.f32 %v313, %v2580
        %v2582 = vand.u32 %v2581, 4294901760
        %2583 = vmatprep.subr.mxu0 %v2582
        %v2584 = vand.u32 %v312, 4294901760
        %v2585 = vsub.f32 %v312, %v2584
        %v2586 = vand.u32 %v2585, 4294901760
        %2587 = vmatpush1.msra.mxu0 %v2586
        %v2588 = vand.u32 %v315, 4294901760
        %v2589 = vsub.f32 %v315, %v2588
        %v2590 = vand.u32 %v2589, 4294901760
        %2591 = vmatprep.subr.mxu0 %v2590
        %v2592 = vand.u32 %v314, 4294901760
        %v2593 = vsub.f32 %v314, %v2592
        %v2594 = vand.u32 %v2593, 4294901760
        %2595 = vmatpush1.msra.mxu0 %v2594
        %v2596 = vand.u32 %v317, 4294901760
        %v2597 = vsub.f32 %v317, %v2596
        %v2598 = vand.u32 %v2597, 4294901760
        %2599 = vmatprep.subr.mxu0 %v2598
        %v2600 = vand.u32 %v316, 4294901760
        %v2601 = vsub.f32 %v316, %v2600
        %v2602 = vand.u32 %v2601, 4294901760
        %2603 = vmatpush1.msra.mxu0 %v2602
        %v2604 = vand.u32 %v319, 4294901760
        %v2605 = vsub.f32 %v319, %v2604
        %v2606 = vand.u32 %v2605, 4294901760
        %2607 = vmatprep.subr.mxu0 %v2606
        %v2608 = vand.u32 %v318, 4294901760
        %v2609 = vsub.f32 %v318, %v2608
        %v2610 = vand.u32 %v2609, 4294901760
        %2611 = vmatpush1.msra.mxu0 %v2610
        %v2612 = vand.u32 %v321, 4294901760
        %v2613 = vsub.f32 %v321, %v2612
        %v2614 = vand.u32 %v2613, 4294901760
        %2615 = vmatprep.subr.mxu0 %v2614
        %v2616 = vand.u32 %v320, 4294901760
        %v2617 = vsub.f32 %v320, %v2616
        %v2618 = vand.u32 %v2617, 4294901760
        %2619 = vmatpush1.msra.mxu0 %v2618
        %v2620 = vand.u32 %v323, 4294901760
        %v2621 = vsub.f32 %v323, %v2620
        %v2622 = vand.u32 %v2621, 4294901760
        %2623 = vmatprep.subr.mxu0 %v2622
        %v2624 = vand.u32 %v322, 4294901760
        %v2625 = vsub.f32 %v322, %v2624
        %v2626 = vand.u32 %v2625, 4294901760
        %2627 = vmatpush1.msra.mxu0 %v2626
        %v2628 = vand.u32 %v325, 4294901760
        %v2629 = vsub.f32 %v325, %v2628
        %v2630 = vand.u32 %v2629, 4294901760
        %2631 = vmatprep.subr.mxu0 %v2630
        %v2632 = vand.u32 %v324, 4294901760
        %v2633 = vsub.f32 %v324, %v2632
        %v2634 = vand.u32 %v2633, 4294901760
        %2635 = vmatpush1.msra.mxu0 %v2634
        %v2636 = vand.u32 %v327, 4294901760
        %v2637 = vsub.f32 %v327, %v2636
        %v2638 = vand.u32 %v2637, 4294901760
        %2639 = vmatprep.subr.mxu0 %v2638
        %v2640 = vand.u32 %v326, 4294901760
        %v2641 = vsub.f32 %v326, %v2640
        %v2642 = vand.u32 %v2641, 4294901760
        %2643 = vmatpush1.msra.mxu0 %v2642
        %v2644 = vand.u32 %v329, 4294901760
        %v2645 = vsub.f32 %v329, %v2644
        %v2646 = vand.u32 %v2645, 4294901760
        %2647 = vmatprep.subr.mxu0 %v2646
        %v2648 = vand.u32 %v328, 4294901760
        %v2649 = vsub.f32 %v328, %v2648
        %v2650 = vand.u32 %v2649, 4294901760
        %2651 = vmatpush1.msra.mxu0 %v2650
        %v2652 = vand.u32 %v331, 4294901760
        %v2653 = vsub.f32 %v331, %v2652
        %v2654 = vand.u32 %v2653, 4294901760
        %2655 = vmatprep.subr.mxu0 %v2654
        %v2656 = vand.u32 %v330, 4294901760
        %v2657 = vsub.f32 %v330, %v2656
        %v2658 = vand.u32 %v2657, 4294901760
        %2659 = vmatpush1.msra.mxu0 %v2658
        %v2660 = vand.u32 %v333, 4294901760
        %v2661 = vsub.f32 %v333, %v2660
        %v2662 = vand.u32 %v2661, 4294901760
        %2663 = vmatprep.subr.mxu0 %v2662
        %v2664 = vand.u32 %v332, 4294901760
        %v2665 = vsub.f32 %v332, %v2664
        %v2666 = vand.u32 %v2665, 4294901760
        %2667 = vmatpush1.msra.mxu0 %v2666
        %v2668 = vand.u32 %v335, 4294901760
        %v2669 = vsub.f32 %v335, %v2668
        %v2670 = vand.u32 %v2669, 4294901760
        %2671 = vmatprep.subr.mxu0 %v2670
        %v2672 = vand.u32 %v334, 4294901760
        %v2673 = vsub.f32 %v334, %v2672
        %v2674 = vand.u32 %v2673, 4294901760
        %2675 = vmatpush1.msra.mxu0 %v2674
        %v2676 = vand.u32 %v337, 4294901760
        %v2677 = vsub.f32 %v337, %v2676
        %v2678 = vand.u32 %v2677, 4294901760
        %2679 = vmatprep.subr.mxu0 %v2678
        %v2680 = vand.u32 %v336, 4294901760
        %v2681 = vsub.f32 %v336, %v2680
        %v2682 = vand.u32 %v2681, 4294901760
        %2683 = vmatpush1.msra.mxu0 %v2682
        %v2684 = vand.u32 %v339, 4294901760
        %v2685 = vsub.f32 %v339, %v2684
        %v2686 = vand.u32 %v2685, 4294901760
        %2687 = vmatprep.subr.mxu0 %v2686
        %v2688 = vand.u32 %v338, 4294901760
        %v2689 = vsub.f32 %v338, %v2688
        %v2690 = vand.u32 %v2689, 4294901760
        %2691 = vmatpush1.msra.mxu0 %v2690
        %v2692 = vand.u32 %v341, 4294901760
        %v2693 = vsub.f32 %v341, %v2692
        %v2694 = vand.u32 %v2693, 4294901760
        %2695 = vmatprep.subr.mxu0 %v2694
        %v2696 = vand.u32 %v340, 4294901760
        %v2697 = vsub.f32 %v340, %v2696
        %v2698 = vand.u32 %v2697, 4294901760
        %2699 = vmatpush1.msra.mxu0 %v2698
        %v2700 = vand.u32 %v343, 4294901760
        %v2701 = vsub.f32 %v343, %v2700
        %v2702 = vand.u32 %v2701, 4294901760
        %2703 = vmatprep.subr.mxu0 %v2702
        %v2704 = vand.u32 %v342, 4294901760
        %v2705 = vsub.f32 %v342, %v2704
        %v2706 = vand.u32 %v2705, 4294901760
        %2707 = vmatpush1.msra.mxu0 %v2706
        %v2708 = vand.u32 %v345, 4294901760
        %v2709 = vsub.f32 %v345, %v2708
        %v2710 = vand.u32 %v2709, 4294901760
        %2711 = vmatprep.subr.mxu0 %v2710
        %v2712 = vand.u32 %v344, 4294901760
        %v2713 = vsub.f32 %v344, %v2712
        %v2714 = vand.u32 %v2713, 4294901760
        %2715 = vmatpush1.msra.mxu0 %v2714
        %v2716 = vand.u32 %v347, 4294901760
        %v2717 = vsub.f32 %v347, %v2716
        %v2718 = vand.u32 %v2717, 4294901760
        %2719 = vmatprep.subr.mxu0 %v2718
        %v2720 = vand.u32 %v346, 4294901760
        %v2721 = vsub.f32 %v346, %v2720
        %v2722 = vand.u32 %v2721, 4294901760
        %2723 = vmatpush1.msra.mxu0 %v2722
        %v2724 = vand.u32 %v349, 4294901760
        %v2725 = vsub.f32 %v349, %v2724
        %v2726 = vand.u32 %v2725, 4294901760
        %2727 = vmatprep.subr.mxu0 %v2726
        %v2728 = vand.u32 %v348, 4294901760
        %v2729 = vsub.f32 %v348, %v2728
        %v2730 = vand.u32 %v2729, 4294901760
        %2731 = vmatpush1.msra.mxu0 %v2730
        %v2732 = vand.u32 %v351, 4294901760
        %v2733 = vsub.f32 %v351, %v2732
        %v2734 = vand.u32 %v2733, 4294901760
        %2735 = vmatprep.subr.mxu0 %v2734
        %v2736 = vand.u32 %v350, 4294901760
        %v2737 = vsub.f32 %v350, %v2736
        %v2738 = vand.u32 %v2737, 4294901760
        %2739 = vmatpush1.msra.mxu0 %v2738
        %v2740 = vand.u32 %v353, 4294901760
        %v2741 = vsub.f32 %v353, %v2740
        %v2742 = vand.u32 %v2741, 4294901760
        %2743 = vmatprep.subr.mxu0 %v2742
        %v2744 = vand.u32 %v352, 4294901760
        %v2745 = vsub.f32 %v352, %v2744
        %v2746 = vand.u32 %v2745, 4294901760
        %2747 = vmatpush1.msra.mxu0 %v2746
        %v2748 = vand.u32 %v355, 4294901760
        %v2749 = vsub.f32 %v355, %v2748
        %v2750 = vand.u32 %v2749, 4294901760
        %2751 = vmatprep.subr.mxu0 %v2750
        %v2752 = vand.u32 %v354, 4294901760
        %v2753 = vsub.f32 %v354, %v2752
        %v2754 = vand.u32 %v2753, 4294901760
        %2755 = vmatpush1.msra.mxu0 %v2754
        %v2756 = vand.u32 %v357, 4294901760
        %v2757 = vsub.f32 %v357, %v2756
        %v2758 = vand.u32 %v2757, 4294901760
        %2759 = vmatprep.subr.mxu0 %v2758
        %v2760 = vand.u32 %v356, 4294901760
        %v2761 = vsub.f32 %v356, %v2760
        %v2762 = vand.u32 %v2761, 4294901760
        %2763 = vmatpush1.msra.mxu0 %v2762
        %v2764 = vand.u32 %v359, 4294901760
        %v2765 = vsub.f32 %v359, %v2764
        %v2766 = vand.u32 %v2765, 4294901760
        %2767 = vmatprep.subr.mxu0 %v2766
        %v2768 = vand.u32 %v358, 4294901760
        %v2769 = vsub.f32 %v358, %v2768
        %v2770 = vand.u32 %v2769, 4294901760
        %2771 = vmatpush1.msra.mxu0 %v2770
        %v2772 = vand.u32 %v361, 4294901760
        %v2773 = vsub.f32 %v361, %v2772
        %v2774 = vand.u32 %v2773, 4294901760
        %2775 = vmatprep.subr.mxu0 %v2774
        %v2776 = vand.u32 %v360, 4294901760
        %v2777 = vsub.f32 %v360, %v2776
        %v2778 = vand.u32 %v2777, 4294901760
        %2779 = vmatpush1.msra.mxu0 %v2778
        %v2780 = vand.u32 %v363, 4294901760
        %v2781 = vsub.f32 %v363, %v2780
        %v2782 = vand.u32 %v2781, 4294901760
        %2783 = vmatprep.subr.mxu0 %v2782
        %v2784 = vand.u32 %v362, 4294901760
        %v2785 = vsub.f32 %v362, %v2784
        %v2786 = vand.u32 %v2785, 4294901760
        %2787 = vmatpush1.msra.mxu0 %v2786
        %v2788 = vand.u32 %v235, 4294901760
        %2789 = vmatprep.mubr.f32.mxu0 %v2788
        %v2790 = vand.u32 %v231, 4294901760
        %2791 = vmatmul.mubr.f32.gmra.mrb[0].mxu0 %v2790
        %v2792 = vpop.f32.mrb[0].mxu0
        %v2793 = vadd.f32 %v2528, %v2792
        %v2794 = vpop.f32.mrb[0].mxu0
        %v2795 = vadd.f32 %v2530, %v2794
        %2796 = vdwg.mxu0
        %v2797 = vand.u32 %v301, 4294901760
        %2798 = vmatprep.subr.mxu0 %v2797
        %v2799 = vand.u32 %v300, 4294901760
        %2800 = vmatpush1.msra.mxu0 %v2799
        %v2801 = vand.u32 %v303, 4294901760
        %2802 = vmatprep.subr.mxu0 %v2801
        %v2803 = vand.u32 %v302, 4294901760
        %2804 = vmatpush1.msra.mxu0 %v2803
        %v2805 = vand.u32 %v305, 4294901760
        %2806 = vmatprep.subr.mxu0 %v2805
        %v2807 = vand.u32 %v304, 4294901760
        %2808 = vmatpush1.msra.mxu0 %v2807
        %v2809 = vand.u32 %v307, 4294901760
        %2810 = vmatprep.subr.mxu0 %v2809
        %v2811 = vand.u32 %v306, 4294901760
        %2812 = vmatpush1.msra.mxu0 %v2811
        %v2813 = vand.u32 %v309, 4294901760
        %2814 = vmatprep.subr.mxu0 %v2813
        %v2815 = vand.u32 %v308, 4294901760
        %2816 = vmatpush1.msra.mxu0 %v2815
        %v2817 = vand.u32 %v311, 4294901760
        %2818 = vmatprep.subr.mxu0 %v2817
        %v2819 = vand.u32 %v310, 4294901760
        %2820 = vmatpush1.msra.mxu0 %v2819
        %v2821 = vand.u32 %v313, 4294901760
        %2822 = vmatprep.subr.mxu0 %v2821
        %v2823 = vand.u32 %v312, 4294901760
        %2824 = vmatpush1.msra.mxu0 %v2823
        %v2825 = vand.u32 %v315, 4294901760
        %2826 = vmatprep.subr.mxu0 %v2825
        %v2827 = vand.u32 %v314, 4294901760
        %2828 = vmatpush1.msra.mxu0 %v2827
        %v2829 = vand.u32 %v317, 4294901760
        %2830 = vmatprep.subr.mxu0 %v2829
        %v2831 = vand.u32 %v316, 4294901760
        %2832 = vmatpush1.msra.mxu0 %v2831
        %v2833 = vand.u32 %v319, 4294901760
        %2834 = vmatprep.subr.mxu0 %v2833
        %v2835 = vand.u32 %v318, 4294901760
        %2836 = vmatpush1.msra.mxu0 %v2835
        %v2837 = vand.u32 %v321, 4294901760
        %2838 = vmatprep.subr.mxu0 %v2837
        %v2839 = vand.u32 %v320, 4294901760
        %2840 = vmatpush1.msra.mxu0 %v2839
        %v2841 = vand.u32 %v323, 4294901760
        %2842 = vmatprep.subr.mxu0 %v2841
        %v2843 = vand.u32 %v322, 4294901760
        %2844 = vmatpush1.msra.mxu0 %v2843
        %v2845 = vand.u32 %v325, 4294901760
        %2846 = vmatprep.subr.mxu0 %v2845
        %v2847 = vand.u32 %v324, 4294901760
        %2848 = vmatpush1.msra.mxu0 %v2847
        %v2849 = vand.u32 %v327, 4294901760
        %2850 = vmatprep.subr.mxu0 %v2849
        %v2851 = vand.u32 %v326, 4294901760
        %2852 = vmatpush1.msra.mxu0 %v2851
        %v2853 = vand.u32 %v329, 4294901760
        %2854 = vmatprep.subr.mxu0 %v2853
        %v2855 = vand.u32 %v328, 4294901760
        %2856 = vmatpush1.msra.mxu0 %v2855
        %v2857 = vand.u32 %v331, 4294901760
        %2858 = vmatprep.subr.mxu0 %v2857
        %v2859 = vand.u32 %v330, 4294901760
        %2860 = vmatpush1.msra.mxu0 %v2859
        %v2861 = vand.u32 %v333, 4294901760
        %2862 = vmatprep.subr.mxu0 %v2861
        %v2863 = vand.u32 %v332, 4294901760
        %2864 = vmatpush1.msra.mxu0 %v2863
        %v2865 = vand.u32 %v335, 4294901760
        %2866 = vmatprep.subr.mxu0 %v2865
        %v2867 = vand.u32 %v334, 4294901760
        %2868 = vmatpush1.msra.mxu0 %v2867
        %v2869 = vand.u32 %v337, 4294901760
        %2870 = vmatprep.subr.mxu0 %v2869
        %v2871 = vand.u32 %v336, 4294901760
        %2872 = vmatpush1.msra.mxu0 %v2871
        %v2873 = vand.u32 %v339, 4294901760
        %2874 = vmatprep.subr.mxu0 %v2873
        %v2875 = vand.u32 %v338, 4294901760
        %2876 = vmatpush1.msra.mxu0 %v2875
        %v2877 = vand.u32 %v341, 4294901760
        %2878 = vmatprep.subr.mxu0 %v2877
        %v2879 = vand.u32 %v340, 4294901760
        %2880 = vmatpush1.msra.mxu0 %v2879
        %v2881 = vand.u32 %v343, 4294901760
        %2882 = vmatprep.subr.mxu0 %v2881
        %v2883 = vand.u32 %v342, 4294901760
        %2884 = vmatpush1.msra.mxu0 %v2883
        %v2885 = vand.u32 %v345, 4294901760
        %2886 = vmatprep.subr.mxu0 %v2885
        %v2887 = vand.u32 %v344, 4294901760
        %2888 = vmatpush1.msra.mxu0 %v2887
        %v2889 = vand.u32 %v347, 4294901760
        %2890 = vmatprep.subr.mxu0 %v2889
        %v2891 = vand.u32 %v346, 4294901760
        %2892 = vmatpush1.msra.mxu0 %v2891
        %v2893 = vand.u32 %v349, 4294901760
        %2894 = vmatprep.subr.mxu0 %v2893
        %v2895 = vand.u32 %v348, 4294901760
        %2896 = vmatpush1.msra.mxu0 %v2895
        %v2897 = vand.u32 %v351, 4294901760
        %2898 = vmatprep.subr.mxu0 %v2897
        %v2899 = vand.u32 %v350, 4294901760
        %2900 = vmatpush1.msra.mxu0 %v2899
        %v2901 = vand.u32 %v353, 4294901760
        %2902 = vmatprep.subr.mxu0 %v2901
        %v2903 = vand.u32 %v352, 4294901760
        %2904 = vmatpush1.msra.mxu0 %v2903
        %v2905 = vand.u32 %v355, 4294901760
        %2906 = vmatprep.subr.mxu0 %v2905
        %v2907 = vand.u32 %v354, 4294901760
        %2908 = vmatpush1.msra.mxu0 %v2907
        %v2909 = vand.u32 %v357, 4294901760
        %2910 = vmatprep.subr.mxu0 %v2909
        %v2911 = vand.u32 %v356, 4294901760
        %2912 = vmatpush1.msra.mxu0 %v2911
        %v2913 = vand.u32 %v359, 4294901760
        %2914 = vmatprep.subr.mxu0 %v2913
        %v2915 = vand.u32 %v358, 4294901760
        %2916 = vmatpush1.msra.mxu0 %v2915
        %v2917 = vand.u32 %v361, 4294901760
        %2918 = vmatprep.subr.mxu0 %v2917
        %v2919 = vand.u32 %v360, 4294901760
        %2920 = vmatpush1.msra.mxu0 %v2919
        %v2921 = vand.u32 %v363, 4294901760
        %2922 = vmatprep.subr.mxu0 %v2921
        %v2923 = vand.u32 %v362, 4294901760
        %2924 = vmatpush1.msra.mxu0 %v2923
        %v2925 = vand.u32 %v235, 4294901760
        %2926 = vmatprep.mubr.f32.mxu0 %v2925
        %v2927 = vand.u32 %v231, 4294901760
        %2928 = vmatmul.mubr.f32.gmra.mrb[0].mxu0 %v2927
        %v2929 = vpop.f32.mrb[0].mxu0
        %v2930 = vadd.f32 %v2793, %v2929
        %v2931 = vpop.f32.mrb[0].mxu0
        %v2932 = vadd.f32 %v2795, %v2931
        %2933 = vdwg.mxu0
        %v2934 = vxor.u32 %v2930, 2147483648
        %v2935 = vxor.u32 %v2932, 2147483648
        %v2936 = vmul.f32 %v2934, 1.442695
        %v2937 = vpow.pop %v2936
        %v2938 = vmul.f32 %v2935, 1.442695
        %v2939 = vpow.pop %v2938
        %v2940 = vadd.f32 %v2937, 1.0
        %v2941 = vadd.f32 %v2939, 1.0
        %v2942 = vrcp.pop %v2940
        %v2943 = vmul.f32 1.0, %v2942
        %v2944 = vrcp.pop %v2941
        %v2945 = vmul.f32 1.0, %v2944
        %v2946 = vlaneseq
        %v2947 = vshrl.u32 %v2946, 7
        %v2948 = vsub.s32 0, %v2947
        %v2949 = vrot.slane %v2943, %v2948
        %v2950 = vlaneseq
        %v2951 = vshrl.u32 %v2950, 7
        %v2952 = vsub.s32 0, %v2951
        %v2953 = vrot.slane %v2945, %v2952
        %v2956 = vcombine.low %v2949, %v2953
        %v2958 = vmul.f32 %v187, %v2956
        %2959 = vst [vmem:[%s186] sm:$0xff] %v2958
        %p2960 = scmp.lt.s32.totalorder %s16, 1
        %s2961 = scalar_select %p2960, %s16, 1
        %s2962 = smul.addr %s2961, 2
        %s2963 = smul.addr %s2962, 4
        %s2964 = scalar_lea.vmem %s3, %s2963
        // Predicated region
        $region37: #{sa_layer_pallas.1} parent=31 // pred_check
          %p2965 = pneg %p102
        $region38: #{sa_layer_pallas.1} parent=31 // pred_check_branch
          %2967 = sbr.rel (%p2965) target = $region40
        $region39: #{sa_layer_pallas.1} parent=31 // pred_region
          _
        $region40: #{sa_layer_pallas.1} parent=31 // pred_fallthru
          _
      $region32: #{sa_layer_pallas.1} parent=5 // pred_fallthru
        _
      %p2968 = scmp.le.s32.totalorder 2, %s11
      // Predicated region
      $region41: #{sa_layer_pallas.1} parent=5 // pred_check
        %p2969 = pneg %p2968
      $region42: #{sa_layer_pallas.1} parent=5 // pred_check_branch
        %2971 = sbr.rel (%p2969) target = $region44
      $region43: #{sa_layer_pallas.1} parent=5 // pred_region
        %s2972 = ssub.s32 %s11, 2
        // Predicated region
        $region45: #{sa_layer_pallas.1} parent=43 // pred_check
          %p2973 = pneg %p108
        $region46: #{sa_layer_pallas.1} parent=43 // pred_check_branch
          %2975 = sbr.rel (%p2973) target = $region48
        $region47: #{sa_layer_pallas.1} parent=43 // pred_region
          %p2976 = scmp.lt.s32.totalorder %s17, 1
          %s2977 = scalar_select %p2976, %s17, 1
          %s2978 = smul.addr %s2977, 2
          %s2979 = smul.addr %s2978, 4
          %s2980 = scalar_lea.vmem %s3, %s2979
        $region48: #{sa_layer_pallas.1} parent=43 // pred_fallthru
          _
      $region44: #{sa_layer_pallas.1} parent=5 // pred_fallthru
        _
    $region6: #{sa_layer_pallas.1} parent=1 // loop_footer
      %s15 = sadd.s32 1, %s11
    $region7: #{sa_layer_pallas.1} parent=1 // loop_footer_branch
      %10 = sbr.rel target = $region3
    $region8: #{sa_layer_pallas.1} parent=1 // loop_exit
      _
    %2981 = vsyncpa [#allocation4], 1
    %s2982 = scalar_lea.sflag [#allocation4], 1
    %2983 = vsyncpa %s2982, 1

</llo_original>
